<compile_context>
chip_gen: v6e
topology: v6e:2x2x1
jax: 0.10.0
libtpu: 0.0.40
codegen_flags: <defaults>
</compile_context>

<pallas_src>
import functools

import jax
import jax.numpy as jnp
from jax.experimental import pallas as pl
from jax.experimental.pallas import tpu as pltpu

LN_EPS = 1e-5  # nn.LayerNorm default


def ffn_kernel(x_ref, g_ref, beta_ref, w1_ref, b1_ref, w2_ref, b2_ref,
               o_ref, xn_ref, *acc_scratch):
    """One (row-tile i, hidden-tile j) step of out = W2(relu(W1(LN(x))+b1))+b2+x."""
    # f32 outputs accumulate straight into the resident output block.
    acc_ref = acc_scratch[0] if acc_scratch else o_ref
    j = pl.program_id(1)

    @pl.when(j == 0)
    def _():
        # LayerNorm once per row tile; cache bf16 normalized activations.
        x = x_ref[...].astype(jnp.float32)                         # (tm, size)
        mean = jnp.mean(x, axis=-1, keepdims=True)
        var = jnp.mean(jnp.square(x - mean), axis=-1, keepdims=True)
        xn = (x - mean) * jax.lax.rsqrt(var + LN_EPS)
        xn = xn * g_ref[...] + beta_ref[...]
        xn_ref[...] = xn.astype(xn_ref.dtype)
        acc_ref[...] = jnp.zeros_like(acc_ref)

    # h_j = relu(LN(x) @ W1[:, j-th slice] + b1[j])   -> (tm, th) in f32
    h = jnp.dot(xn_ref[...], w1_ref[0], preferred_element_type=jnp.float32)
    h = jnp.maximum(h + b1_ref[...], 0.0)

    # acc += h_j @ W2[j-th slice, :]                  -> (tm, size) f32
    acc_ref[...] += jnp.dot(h.astype(w2_ref.dtype), w2_ref[...],
                            preferred_element_type=jnp.float32)

    @pl.when(j == pl.num_programs(1) - 1)
    def _():
        y = acc_ref[...].astype(jnp.float32) + b2_ref[...] + x_ref[...].astype(jnp.float32)
        o_ref[...] = y.astype(o_ref.dtype)


def _round_up(n, m):
    return ((n + m - 1) // m) * m


def _sublane_multiple(dtype):
    # (8,128) tiling for 32-bit, (16,128) for bf16, (32,128) for int8/fp8.
    return max(8, 32 // jnp.dtype(dtype).itemsize)


def _vmem_limit_bytes():
    """min(85% of physical, physical - 12 MiB); conservative 48 MiB fallback."""
    try:
        phys = int(pltpu.get_tpu_info().vmem_capacity_bytes)
        return max(32 * 1024 * 1024,
                   min(int(phys * 0.85), phys - 12 * 1024 * 1024))
    except Exception:
        return 48 * 1024 * 1024


def _device_kind():
    try:
        return jax.devices()[0].device_kind.lower()
    except Exception:
        return ""


def _streaming_row_target():
    """Rows/weight-byte needed to hide weight DMA under MXU time when streaming."""
    kind = _device_kind()
    if "v6" in kind:
        return 768       # ~918 TF/s vs ~1.3 TB/s -> knee ~700 rows
    if "v5" in kind:
        return 512       # ~197 TF/s vs ~0.82 TB/s -> knee ~240 rows
    return 512           # v7x (~3.2 TB/s/TC) and unknown chips


def _multi_tensorcore_chip():
    kind = _device_kind()
    return any(tag in kind for tag in ("v7", "v5p", "v4"))


def _choose_hidden_tile(hidden, th):
    """Largest 128-multiple tile <= th that divides hidden; else pad hidden."""
    th = max(128, (int(th) // 128) * 128)
    for cand in range(th, 127, -128):
        if hidden % cand == 0:
            return cand
    return th


def positionwise_ffn(x, params, *, tm=None, th=512, max_resident_weight_bytes=None):
    """x: (batch, seq, size) -> (batch, seq, size). Eval-mode forward."""
    gamma, beta, w1, b1, w2, b2 = params
    batch, seq, size = x.shape
    hidden = w1.shape[1]
    M = batch * seq
    out_dtype = x.dtype

    sub = _sublane_multiple(x.dtype)
    acc_in_out = jnp.dtype(out_dtype) == jnp.float32  # accumulate straight into o_ref

    vmem_limit = _vmem_limit_bytes()
    budget = int(vmem_limit * 0.9)  # headroom for compiler internal scratch

    def act_bytes(rows):
        b = 2 * rows * size * jnp.dtype(x.dtype).itemsize       # x, double-buffered
        b += 2 * rows * size * jnp.dtype(out_dtype).itemsize    # out, double-buffered
        b += rows * size * 2                                     # cached LN(x), bf16
        if not acc_in_out:
            b += rows * size * 4                                 # f32 accumulator
        return b

    resident_weight_bytes = 2 * size * hidden * 2 + hidden * 4 + 3 * size * 4
    weight_cap = budget if max_resident_weight_bytes is None else int(max_resident_weight_bytes)

    # --- Row-tile / hidden-tile selection ------------------------------------
    tm_cap = _round_up(M, sub)
    tm_base = min(tm if tm is not None else 256, tm_cap)
    tm_base = max(sub, _round_up(tm_base, sub))

    resident = resident_weight_bytes <= weight_cap
    if resident:
        tm_eff = tm_base
        while tm_eff > sub and resident_weight_bytes + act_bytes(tm_eff) > budget:
            tm_eff = max(sub, _round_up(tm_eff // 2, sub))
        resident = resident_weight_bytes + act_bytes(tm_eff) <= budget

    if resident:
        th_eff = hidden                      # weights resident, fetched once
    else:
        th_eff = _choose_hidden_tile(hidden, th)
        # Streaming regime: push the row tile towards the chip's roofline knee.
        tm_eff = min(max(tm_base, _streaming_row_target()), tm_cap)
        tm_eff = max(sub, _round_up(tm_eff, sub))

        def stream_bytes(rows, tile):
            return (act_bytes(rows)
                    + 2 * 2 * size * tile * 2          # W1+W2 slices, bf16, 2x buffered
                    + 2 * tile * 4 + 3 * size * 4)

        while tm_eff > sub and stream_bytes(tm_eff, th_eff) > budget:
            tm_eff = max(sub, _round_up(tm_eff // 2, sub))
        while th_eff > 128 and stream_bytes(tm_eff, th_eff) > budget:
            th_eff = max(128, (th_eff // 2 // 128) * 128)

    hidden_p = _round_up(hidden, th_eff)
    nj = hidden_p // th_eff

    # Megacore: ensure the only "parallel" axis has >= 2 steps when possible
    # (needed for v7x's 2 TCs; free when weights are resident).
    if (_round_up(M, tm_eff) // tm_eff) == 1 and M > sub and (resident or _multi_tensorcore_chip()):
        tm_eff = max(sub, _round_up(-(-M // 2), sub))

    Mp = _round_up(M, tm_eff)
    ni = Mp // tm_eff

    # --- Operand preparation --------------------------------------------------
    x2d = x.reshape(M, size)
    if Mp != M:
        x2d = jnp.pad(x2d, ((0, Mp - M), (0, 0)))

    # bf16 weights for the MXU; accumulation stays f32 in-kernel.
    w1b = w1.astype(jnp.bfloat16)
    w2b = w2.astype(jnp.bfloat16)
    b1p = b1
    if hidden_p != hidden:  # zero-padded hidden units contribute exactly 0
        w1b = jnp.pad(w1b, ((0, 0), (0, hidden_p - hidden)))
        b1p = jnp.pad(b1, ((0, 0), (0, hidden_p - hidden)))
        w2b = jnp.pad(w2b, ((0, hidden_p - hidden), (0, 0)))
    # (nj, size, th) layout: each streamed W1 block is one contiguous DMA.
    w1b = w1b.reshape(size, nj, th_eff).transpose(1, 0, 2)

    single = pl.Buffered(1)  # grid-invariant operands: fetch once, no 2x VMEM

    def const_spec(shape):
        return pl.BlockSpec(shape, lambda i, j: (0,) * len(shape), pipeline_mode=single)

    def weight_spec(shape, index_map):
        if nj == 1:  # weights grid-invariant -> single-buffer, resident
            return pl.BlockSpec(shape, index_map, pipeline_mode=single)
        return pl.BlockSpec(shape, index_map)  # stream: default double-buffer

    in_specs = [
        pl.BlockSpec((tm_eff, size), lambda i, j: (i, 0)),                 # x rows
        const_spec((1, size)),                                             # gamma
        const_spec((1, size)),                                             # beta
        weight_spec((1, size, th_eff), lambda i, j: (j, 0, 0)),            # W1 slice
        weight_spec((1, th_eff), lambda i, j: (0, j)),                     # b1 slice
        weight_spec((th_eff, size), lambda i, j: (j, 0)),                  # W2 slice
        const_spec((1, size)),                                             # b2
    ]

    scratch_shapes = [pltpu.VMEM((tm_eff, size), jnp.bfloat16)]            # cached LN(x)
    if not acc_in_out:
        scratch_shapes.append(pltpu.VMEM((tm_eff, size), jnp.float32))     # f32 accumulator

    weight_stream_bytes = (2 * size * hidden_p * 2 + hidden_p * 4) * (ni if nj > 1 else 1)
    cost = pl.CostEstimate(
        flops=int(4 * Mp * size * hidden_p),                               # two matmuls
        transcendentals=int(Mp),                                           # one rsqrt per row
        bytes_accessed=int(Mp * size * (jnp.dtype(x.dtype).itemsize
                                        + jnp.dtype(out_dtype).itemsize)   # x in + out
                           + weight_stream_bytes                           # real weight traffic
                           + 3 * size * 4),                                # affine / b2
    )

    out2d = pl.pallas_call(
        ffn_kernel,
        out_shape=jax.ShapeDtypeStruct((Mp, size), out_dtype),
        grid_spec=pltpu.PrefetchScalarGridSpec(
            num_scalar_prefetch=0,
            grid=(ni, nj),
            in_specs=in_specs,
            out_specs=pl.BlockSpec((tm_eff, size), lambda i, j: (i, 0)),
            scratch_shapes=scratch_shapes,
        ),
        compiler_params=pltpu.CompilerParams(
            dimension_semantics=("parallel", "arbitrary"),
            vmem_limit_bytes=vmem_limit,
        ),
        cost_estimate=cost,
    )(x2d, gamma, beta, w1b, b1p, w2b, b2)

    return out2d[:M].reshape(batch, seq, size)


def init_params(key, size, hidden):
    """Deterministic params (PyTorch-Linear-style bounds; non-trivial LN affine)."""
    k1, k2, k3, k4, k5, k6 = jax.random.split(key, 6)
    bound1 = 1.0 / (size ** 0.5)
    bound2 = 1.0 / (hidden ** 0.5)
    gamma = 1.0 + 0.1 * jax.random.normal(k5, (1, size), jnp.float32)
    beta = 0.1 * jax.random.normal(k6, (1, size), jnp.float32)
    # nn.Linear stores (out, in); build (in, out) directly so the kernel does x @ W.
    w1 = jax.random.uniform(k1, (size, hidden), jnp.float32, -bound1, bound1)
    b1 = jax.random.uniform(k2, (1, hidden), jnp.float32, -bound1, bound1)
    w2 = jax.random.uniform(k3, (hidden, size), jnp.float32, -bound2, bound2)
    b2 = jax.random.uniform(k4, (1, size), jnp.float32, -bound2, bound2)
    return gamma, beta, w1, b1, w2, b2


def ffn_reference(x, params):
    """Pure-JAX f32 reference."""
    gamma, beta, w1, b1, w2, b2 = params
    mean = jnp.mean(x, axis=-1, keepdims=True)
    var = jnp.mean((x - mean) ** 2, axis=-1, keepdims=True)
    xn = (x - mean) * jax.lax.rsqrt(var + LN_EPS) * gamma[0] + beta[0]
    h = jnp.maximum(xn @ w1 + b1[0], 0.0)
    return h @ w2 + b2[0] + x


if __name__ == "__main__":
    key = jax.random.PRNGKey(0)

    def run_case(batch, seq, size, hidden, *, dtype=jnp.float32,
                 atol=2e-2, rtol=2e-2, **kw):
        kx, kp = jax.random.split(jax.random.fold_in(key, batch * 131 + seq))
        x = jax.random.normal(kx, (batch, seq, size), jnp.float32)
        params = init_params(kp, size, hidden)
        x = x.astype(dtype)
        fn = jax.jit(functools.partial(positionwise_ffn, **kw))
        out = jax.block_until_ready(fn(x, params))
        assert out.shape == x.shape and out.dtype == x.dtype
        ref = ffn_reference(x.astype(jnp.float32), params)
        err = float(jnp.max(jnp.abs(out.astype(jnp.float32) - ref)))
        assert jnp.allclose(out.astype(jnp.float32), ref, atol=atol, rtol=rtol), \
            f"mismatch vs reference (max abs err {err})"

    # Resident-weight path, aligned rows (512 tokens -> >=2 row tiles).
    run_case(batch=2, seq=256, size=128, hidden=256)
    # Resident-weight path, ragged rows (57 tokens -> padded, split for megacore).
    run_case(batch=3, seq=19, size=128, hidden=256)
    # Forced hidden-streaming path (nj=2) exercising the f32 accumulate-into-output kernel.
    run_case(batch=2, seq=256, size=128, hidden=256, th=128, max_resident_weight_bytes=0)
    # bf16 activations: exercises (16,128) sublane rounding and the f32-acc-scratch kernel.
    run_case(batch=1, seq=40, size=128, hidden=256, dtype=jnp.bfloat16, atol=6e-2, rtol=6e-2)

    print("KERNEL_OK")
</pallas_src>

<mosaic_0001>
module attributes {stable_mosaic.version = 11 : i64} {
  func.func @ffn_kernel(%arg0: i32, %arg1: i32, %arg2: memref<256x128xf32, #tpu.memory_space<vmem>>, %arg3: memref<1x128xf32, #tpu.memory_space<vmem>>, %arg4: memref<1x128xf32, #tpu.memory_space<vmem>>, %arg5: memref<1x128x256xbf16, #tpu.memory_space<vmem>>, %arg6: memref<1x256xf32, #tpu.memory_space<vmem>>, %arg7: memref<256x128xbf16, #tpu.memory_space<vmem>>, %arg8: memref<1x128xf32, #tpu.memory_space<vmem>>, %arg9: memref<256x128xf32, #tpu.memory_space<vmem>>, %arg10: memref<256x128xbf16, #tpu.memory_space<vmem>>) attributes {dimension_semantics = [#tpu.dimension_semantics<parallel>, #tpu.dimension_semantics<arbitrary>], iteration_bounds = array<i64: 2, 1>, scalar_prefetch = 0 : i64, scratch_operands = 1 : i64, tpu.core_type = #tpu.core_type<tc>, window_params = [{transform_indices = @transform_0, window_bounds = array<i64: 256, 128>}, {pipeline_mode = #tpu.pipeline_mode<synchronous>, transform_indices = @transform_1, window_bounds = array<i64: 1, 128>}, {pipeline_mode = #tpu.pipeline_mode<synchronous>, transform_indices = @transform_2, window_bounds = array<i64: 1, 128>}, {pipeline_mode = #tpu.pipeline_mode<synchronous>, transform_indices = @transform_3, window_bounds = array<i64: 1, 128, 256>}, {pipeline_mode = #tpu.pipeline_mode<synchronous>, transform_indices = @transform_4, window_bounds = array<i64: 1, 256>}, {pipeline_mode = #tpu.pipeline_mode<synchronous>, transform_indices = @transform_5, window_bounds = array<i64: 256, 128>}, {pipeline_mode = #tpu.pipeline_mode<synchronous>, transform_indices = @transform_6, window_bounds = array<i64: 1, 128>}, {transform_indices = @transform_7, window_bounds = array<i64: 256, 128>}]} {
    %c0_i32 = arith.constant 0 : i32
    %0 = arith.cmpi eq, %arg1, %c0_i32 : i32
    %1 = arith.extui %0 : i1 to i32
    %c0_i32_0 = arith.constant 0 : i32
    %2 = arith.cmpi ne, %1, %c0_i32_0 : i32
    scf.if %2 {
      %c0_17 = arith.constant 0 : index
      %c0_18 = arith.constant 0 : index
      %21 = vector.load %arg2[%c0_17, %c0_18] : memref<256x128xf32, #tpu.memory_space<vmem>>, vector<256x128xf32>
      %cst_19 = arith.constant dense<0.000000e+00> : vector<256xf32>
      %22 = vector.multi_reduction <add>, %21, %cst_19 [1] : vector<256x128xf32> to vector<256xf32>
      %23 = vector.shape_cast %22 : vector<256xf32> to vector<256x1xf32>
      %cst_20 = arith.constant 1.280000e+02 : f32
      %24 = vector.broadcast %cst_20 : f32 to vector<256x1xf32>
      %25 = arith.divf %23, %24 : vector<256x1xf32>
      %26 = vector.broadcast %25 : vector<256x1xf32> to vector<256x128xf32>
      %27 = arith.subf %21, %26 : vector<256x128xf32>
      %28 = arith.mulf %27, %27 : vector<256x128xf32>
      %cst_21 = arith.constant dense<0.000000e+00> : vector<256xf32>
      %29 = vector.multi_reduction <add>, %28, %cst_21 [1] : vector<256x128xf32> to vector<256xf32>
      %30 = vector.shape_cast %29 : vector<256xf32> to vector<256x1xf32>
      %cst_22 = arith.constant 1.280000e+02 : f32
      %31 = vector.broadcast %cst_22 : f32 to vector<256x1xf32>
      %32 = arith.divf %30, %31 : vector<256x1xf32>
      %33 = vector.broadcast %25 : vector<256x1xf32> to vector<256x128xf32>
      %34 = arith.subf %21, %33 : vector<256x128xf32>
      %cst_23 = arith.constant 9.99999974E-6 : f32
      %35 = vector.broadcast %cst_23 : f32 to vector<256x1xf32>
      %36 = arith.addf %32, %35 : vector<256x1xf32>
      %37 = math.rsqrt %36 : vector<256x1xf32>
      %38 = vector.broadcast %37 : vector<256x1xf32> to vector<256x128xf32>
      %39 = arith.mulf %34, %38 : vector<256x128xf32>
      %c0_24 = arith.constant 0 : index
      %c0_25 = arith.constant 0 : index
      %40 = vector.load %arg3[%c0_24, %c0_25] : memref<1x128xf32, #tpu.memory_space<vmem>>, vector<1x128xf32>
      %41 = vector.broadcast %40 : vector<1x128xf32> to vector<256x128xf32>
      %42 = arith.mulf %39, %41 : vector<256x128xf32>
      %c0_26 = arith.constant 0 : index
      %c0_27 = arith.constant 0 : index
      %43 = vector.load %arg4[%c0_26, %c0_27] : memref<1x128xf32, #tpu.memory_space<vmem>>, vector<1x128xf32>
      %44 = vector.broadcast %43 : vector<1x128xf32> to vector<256x128xf32>
      %45 = arith.addf %42, %44 : vector<256x128xf32>
      %46 = arith.truncf %45 : vector<256x128xf32> to vector<256x128xbf16>
      %c0_28 = arith.constant 0 : index
      %c0_29 = arith.constant 0 : index
      %47 = vector.load %arg10[%c0_28, %c0_29] : memref<256x128xbf16, #tpu.memory_space<vmem>>, vector<256x128xbf16>
      tpu.vector_store %arg10[%c0_28, %c0_29], %46 {strides = array<i32>} : memref<256x128xbf16, #tpu.memory_space<vmem>>, vector<256x128xbf16>,
      %cst_30 = arith.constant 0.000000e+00 : f32
      %48 = vector.broadcast %cst_30 : f32 to vector<256x128xf32>
      %c0_31 = arith.constant 0 : index
      %c0_32 = arith.constant 0 : index
      %49 = vector.load %arg9[%c0_31, %c0_32] : memref<256x128xf32, #tpu.memory_space<vmem>>, vector<256x128xf32>
      tpu.vector_store %arg9[%c0_31, %c0_32], %48 {strides = array<i32>} : memref<256x128xf32, #tpu.memory_space<vmem>>, vector<256x128xf32>,
    } else {
    }
    %c0 = arith.constant 0 : index
    %c0_1 = arith.constant 0 : index
    %3 = vector.load %arg10[%c0, %c0_1] : memref<256x128xbf16, #tpu.memory_space<vmem>>, vector<256x128xbf16>
    %c0_2 = arith.constant 0 : index
    %c0_3 = arith.constant 0 : index
    %c0_4 = arith.constant 0 : index
    %4 = vector.load %arg5[%c0_2, %c0_3, %c0_4] : memref<1x128x256xbf16, #tpu.memory_space<vmem>>, vector<1x128x256xbf16>
    %5 = vector.shape_cast %4 : vector<1x128x256xbf16> to vector<128x256xbf16>
    %cst = arith.constant dense<0.000000e+00> : vector<256x256xf32>
    %6 = tpu.matmul %3, %5, %cst {dimension_numbers = #tpu.dot_dimension_numbers<[1], [0], [0], [1], [0, 0, 1, 1], [], []>} : vector<256x128xbf16>, vector<128x256xbf16>, vector<256x256xf32> -> vector<256x256xf32>
    %c0_5 = arith.constant 0 : index
    %c0_6 = arith.constant 0 : index
    %7 = vector.load %arg6[%c0_5, %c0_6] : memref<1x256xf32, #tpu.memory_space<vmem>>, vector<1x256xf32>
    %8 = vector.broadcast %7 : vector<1x256xf32> to vector<256x256xf32>
    %9 = arith.addf %6, %8 : vector<256x256xf32>
    %cst_7 = arith.constant 0.000000e+00 : f32
    %10 = vector.broadcast %cst_7 : f32 to vector<256x256xf32>
    %11 = arith.maximumf %9, %10 : vector<256x256xf32>
    %c0_8 = arith.constant 0 : index
    %c0_9 = arith.constant 0 : index
    %12 = vector.load %arg9[%c0_8, %c0_9] : memref<256x128xf32, #tpu.memory_space<vmem>>, vector<256x128xf32>
    %13 = arith.truncf %11 : vector<256x256xf32> to vector<256x256xbf16>
    %c0_10 = arith.constant 0 : index
    %c0_11 = arith.constant 0 : index
    %14 = vector.load %arg7[%c0_10, %c0_11] : memref<256x128xbf16, #tpu.memory_space<vmem>>, vector<256x128xbf16>
    %cst_12 = arith.constant dense<0.000000e+00> : vector<256x128xf32>
    %15 = tpu.matmul %13, %14, %cst_12 {dimension_numbers = #tpu.dot_dimension_numbers<[1], [0], [0], [1], [0, 0, 1, 1], [], []>} : vector<256x256xbf16>, vector<256x128xbf16>, vector<256x128xf32> -> vector<256x128xf32>
    %16 = arith.addf %12, %15 : vector<256x128xf32>
    %c0_13 = arith.constant 0 : index
    %c0_14 = arith.constant 0 : index
    %17 = vector.load %arg9[%c0_13, %c0_14] : memref<256x128xf32, #tpu.memory_space<vmem>>, vector<256x128xf32>
    tpu.vector_store %arg9[%c0_13, %c0_14], %16 {strides = array<i32>} : memref<256x128xf32, #tpu.memory_space<vmem>>, vector<256x128xf32>,
    %c0_i32_15 = arith.constant 0 : i32
    %18 = arith.cmpi eq, %arg1, %c0_i32_15 : i32
    %19 = arith.extui %18 : i1 to i32
    %c0_i32_16 = arith.constant 0 : i32
    %20 = arith.cmpi ne, %19, %c0_i32_16 : i32
    scf.if %20 {
      %c0_17 = arith.constant 0 : index
      %c0_18 = arith.constant 0 : index
      %21 = vector.load %arg9[%c0_17, %c0_18] : memref<256x128xf32, #tpu.memory_space<vmem>>, vector<256x128xf32>
      %c0_19 = arith.constant 0 : index
      %c0_20 = arith.constant 0 : index
      %22 = vector.load %arg8[%c0_19, %c0_20] : memref<1x128xf32, #tpu.memory_space<vmem>>, vector<1x128xf32>
      %23 = vector.broadcast %22 : vector<1x128xf32> to vector<256x128xf32>
      %24 = arith.addf %21, %23 : vector<256x128xf32>
      %c0_21 = arith.constant 0 : index
      %c0_22 = arith.constant 0 : index
      %25 = vector.load %arg2[%c0_21, %c0_22] : memref<256x128xf32, #tpu.memory_space<vmem>>, vector<256x128xf32>
      %26 = arith.addf %24, %25 : vector<256x128xf32>
      %c0_23 = arith.constant 0 : index
      %c0_24 = arith.constant 0 : index
      %27 = vector.load %arg9[%c0_23, %c0_24] : memref<256x128xf32, #tpu.memory_space<vmem>>, vector<256x128xf32>
      tpu.vector_store %arg9[%c0_23, %c0_24], %26 {strides = array<i32>} : memref<256x128xf32, #tpu.memory_space<vmem>>, vector<256x128xf32>,
    } else {
    }
    return
  }
  func.func @transform_0(%arg0: i32, %arg1: i32) -> (i32, i32) {
    %c0_i32 = arith.constant 0 : i32
    %c0_i32_0 = arith.constant 0 : i32
    return %arg0, %c0_i32 : i32, i32
  }
  func.func @transform_1(%arg0: i32, %arg1: i32) -> (i32, i32) {
    %c0_i32 = arith.constant 0 : i32
    %c0_i32_0 = arith.constant 0 : i32
    %c0_i32_1 = arith.constant 0 : i32
    return %c0_i32, %c0_i32_0 : i32, i32
  }
  func.func @transform_2(%arg0: i32, %arg1: i32) -> (i32, i32) {
    %c0_i32 = arith.constant 0 : i32
    %c0_i32_0 = arith.constant 0 : i32
    %c0_i32_1 = arith.constant 0 : i32
    return %c0_i32, %c0_i32_0 : i32, i32
  }
  func.func @transform_3(%arg0: i32, %arg1: i32) -> (i32, i32, i32) {
    %c0_i32 = arith.constant 0 : i32
    %c0_i32_0 = arith.constant 0 : i32
    %c0_i32_1 = arith.constant 0 : i32
    return %arg1, %c0_i32, %c0_i32_0 : i32, i32, i32
  }
  func.func @transform_4(%arg0: i32, %arg1: i32) -> (i32, i32) {
    %c0_i32 = arith.constant 0 : i32
    %c0_i32_0 = arith.constant 0 : i32
    return %c0_i32, %arg1 : i32, i32
  }
  func.func @transform_5(%arg0: i32, %arg1: i32) -> (i32, i32) {
    %c0_i32 = arith.constant 0 : i32
    %c0_i32_0 = arith.constant 0 : i32
    return %arg1, %c0_i32 : i32, i32
  }
  func.func @transform_6(%arg0: i32, %arg1: i32) -> (i32, i32) {
    %c0_i32 = arith.constant 0 : i32
    %c0_i32_0 = arith.constant 0 : i32
    %c0_i32_1 = arith.constant 0 : i32
    return %c0_i32, %c0_i32_0 : i32, i32
  }
  func.func @transform_7(%arg0: i32, %arg1: i32) -> (i32, i32) {
    %c0_i32 = arith.constant 0 : i32
    %c0_i32_0 = arith.constant 0 : i32
    return %arg0, %c0_i32 : i32, i32
  }
}

</mosaic_0001>

<llo_original>
// kernel: positionwise_ffn.1
$region0: #{positionwise_ffn.1}
  #allocation0 [shape = 'u32[]', space=smem, size = 0x4, offset = 0x4, fixed_abs, tag = 'smem constant byte address 0x4 - core index']
  #allocation1 [shape = 'u32[144,128]{1,0:T(1,128)}', space=vmem, size = 0x12000, scoped, tag = 'internal scratch']
  #allocation2 [shape = 'bf16[256,128]{1,0:T(8,128)(2,1)}', space=vmem, size = 0x10000, scoped, tag = 'scratch operand']
  %s0 = inlined_call_operand.vmem [shape: f32[512,128], index: 0, kind: input, shape index: {}]
  %s1 = inlined_call_operand.vmem [shape: f32[1,128], index: 1, kind: input, shape index: {}]
  %s2 = inlined_call_operand.vmem [shape: f32[1,128], index: 2, kind: input, shape index: {}]
  %s3 = inlined_call_operand.vmem [shape: bf16[1,128,256], index: 3, kind: input, shape index: {}]
  %s4 = inlined_call_operand.vmem [shape: f32[1,256], index: 4, kind: input, shape index: {}]
  %s5 = inlined_call_operand.vmem [shape: bf16[256,128], index: 5, kind: input, shape index: {}]
  %s6 = inlined_call_operand.vmem [shape: f32[1,128], index: 6, kind: input, shape index: {}]
  %s7 = inlined_call_operand.hbm [shape: f32[512,128], index: 7, kind: output, shape index: {}]
  %s8 = sld [smem:[#allocation0]]
  $region69: #{positionwise_ffn.1} parent=0
    _
  %s10 = ssub.s32 1, %s8
  %s11 = scalar_select 0, %s10, %s8
  $region1: #{positionwise_ffn.1} parent=0
    #allocation3 [shape = 'u8[262144]{0}', space=vmem, size = 0x40000, scoped, tag = 'output window, operand 0']
    #allocation4 [shape = 's32[2]{0}', space=sflag, size = 0x8, scoped, tag = 'scoped memory for positionwise_ffn.1']
    %12 = vsyncpa [#allocation4], 0
    %s13 = scalar_lea.sflag [#allocation4], 1
    %14 = vsyncpa %s13, 0
    loop: start=0, step=1, limit=4
    $region2: #{positionwise_ffn.1} parent=1 // loop_pre_header
      _
    $region3: #{positionwise_ffn.1} parent=1 // loop_header
      %s16 = sphi 0, %s20
      %p17 = scmp.ge.s32.totalorder %s16, 4
      %s23 = sphi 0, %s35
      %s24 = sphi 0, %s31
      %s25 = sphi 0, %s23
      %s26 = sphi 0, %s24
      %s27 = sphi 0, %s25
      %s28 = sphi 0, %s26
      %s38 = sphi 0, %s40
      %s41 = sphi 0, %s38
      %s42 = sphi 0, %s41
      %s58 = sphi 0, %s42
      %s62 = sphi 0, %s62
      %s64 = sphi 0, %s62
      %s65 = sphi 0, %s64
      %s79 = sphi 0, %s65
      %s83 = sphi 0, %s83
      %s85 = sphi 0, %s83
      %s86 = sphi 0, %s85
      %s100 = sphi 0, %s86
      %s106 = sphi 0, %s108
      %s109 = sphi 0, %s106
      %s110 = sphi 0, %s109
      %s126 = sphi 0, %s110
      %s132 = sphi 0, %s134
      %s135 = sphi 0, %s132
      %s136 = sphi 0, %s135
      %s152 = sphi 0, %s136
      %s158 = sphi 0, %s160
      %s161 = sphi 0, %s158
      %s162 = sphi 0, %s161
      %s178 = sphi 0, %s162
      %s182 = sphi 0, %s182
      %s184 = sphi 0, %s182
      %s185 = sphi 0, %s184
      %s199 = sphi 0, %s185
      %s205 = sphi 0, %s207
      %s208 = sphi 0, %s205
      %s209 = sphi 0, %s208
      %s225 = sphi 0, %s209
    $region4: #{positionwise_ffn.1} parent=1 // loop_header_branch
      %19 = sbr.rel (%p17) target = $region8
    $region5: #{positionwise_ffn.1} parent=1 // loop_body
      %s21 = ssub.s32 %s16, 1
      %s22 = ssub.s32 %s16, 2
      %s29 = sadd.s32 1, %s24
      %p30 = scmp.ge.s32.totalorder %s29, 1
      %s31 = scalar_select %p30, 0, %s29
      %s32 = sadd.s32 1, %s23
      %s33 = scalar_select %p30, %s32, %s23
      %p34 = scmp.ge.s32.totalorder %s33, 2
      %s35 = scalar_select %p34, 0, %s33
      %s36 = ssub.s32 %s23, %s35
      %p37 = scmp.eq.s32.totalorder %s36, 0
      %s39 = sadd.s32 %s38, 1
      %s40 = scalar_select %p37, %s38, %s39
      %p43 = pneg %p37
      %p44 = scmp.eq.s32.totalorder %s16, 1
      %p45 = por %p43, %p44
      %p46 = scmp.ne.s32.totalorder %s38, %s41
      %p47 = scmp.eq.s32.totalorder %s16, 0
      %p48 = por %p46, %p47
      %p49 = scmp.ne.s32.totalorder %s38, %s41
      %p50 = scmp.eq.s32.totalorder %s21, 1
      %p51 = por %p49, %p50
      %p52 = scmp.ne.s32.totalorder %s41, %s42
      %p53 = scmp.eq.s32.totalorder %s21, 0
      %p54 = por %p52, %p53
      %p55 = scmp.ne.s32.totalorder %s41, %s42
      %p56 = scmp.eq.s32.totalorder %s22, 1
      %p57 = por %p55, %p56
      %p59 = scmp.ne.s32.totalorder %s42, %s58
      %p60 = scmp.eq.s32.totalorder %s22, 0
      %p61 = por %p59, %p60
      %s63 = sadd.s32 %s62, 1
      %p66 = scmp.eq.s32.totalorder %s16, 1
      %p67 = scmp.ne.s32.totalorder %s62, %s64
      %p68 = scmp.eq.s32.totalorder %s16, 0
      %p69 = por %p67, %p68
      %p70 = scmp.ne.s32.totalorder %s62, %s64
      %p71 = scmp.eq.s32.totalorder %s21, 1
      %p72 = por %p70, %p71
      %p73 = scmp.ne.s32.totalorder %s64, %s65
      %p74 = scmp.eq.s32.totalorder %s21, 0
      %p75 = por %p73, %p74
      %p76 = scmp.ne.s32.totalorder %s64, %s65
      %p77 = scmp.eq.s32.totalorder %s22, 1
      %p78 = por %p76, %p77
      %p80 = scmp.ne.s32.totalorder %s65, %s79
      %p81 = scmp.eq.s32.totalorder %s22, 0
      %p82 = por %p80, %p81
      %s84 = sadd.s32 %s83, 1
      %p87 = scmp.eq.s32.totalorder %s16, 1
      %p88 = scmp.ne.s32.totalorder %s83, %s85
      %p89 = scmp.eq.s32.totalorder %s16, 0
      %p90 = por %p88, %p89
      %p91 = scmp.ne.s32.totalorder %s83, %s85
      %p92 = scmp.eq.s32.totalorder %s21, 1
      %p93 = por %p91, %p92
      %p94 = scmp.ne.s32.totalorder %s85, %s86
      %p95 = scmp.eq.s32.totalorder %s21, 0
      %p96 = por %p94, %p95
      %p97 = scmp.ne.s32.totalorder %s85, %s86
      %p98 = scmp.eq.s32.totalorder %s22, 1
      %p99 = por %p97, %p98
      %p101 = scmp.ne.s32.totalorder %s86, %s100
      %p102 = scmp.eq.s32.totalorder %s22, 0
      %p103 = por %p101, %p102
      %s104 = ssub.s32 %s24, %s31
      %p105 = scmp.eq.s32.totalorder %s104, 0
      %s107 = sadd.s32 %s106, 1
      %s108 = scalar_select %p105, %s106, %s107
      %p111 = pneg %p105
      %p112 = scmp.eq.s32.totalorder %s16, 1
      %p113 = por %p111, %p112
      %p114 = scmp.ne.s32.totalorder %s106, %s109
      %p115 = scmp.eq.s32.totalorder %s16, 0
      %p116 = por %p114, %p115
      %p117 = scmp.ne.s32.totalorder %s106, %s109
      %p118 = scmp.eq.s32.totalorder %s21, 1
      %p119 = por %p117, %p118
      %p120 = scmp.ne.s32.totalorder %s109, %s110
      %p121 = scmp.eq.s32.totalorder %s21, 0
      %p122 = por %p120, %p121
      %p123 = scmp.ne.s32.totalorder %s109, %s110
      %p124 = scmp.eq.s32.totalorder %s22, 1
      %p125 = por %p123, %p124
      %p127 = scmp.ne.s32.totalorder %s110, %s126
      %p128 = scmp.eq.s32.totalorder %s22, 0
      %p129 = por %p127, %p128
      %s130 = ssub.s32 %s24, %s31
      %p131 = scmp.eq.s32.totalorder %s130, 0
      %s133 = sadd.s32 %s132, 1
      %s134 = scalar_select %p131, %s132, %s133
      %p137 = pneg %p131
      %p138 = scmp.eq.s32.totalorder %s16, 1
      %p139 = por %p137, %p138
      %p140 = scmp.ne.s32.totalorder %s132, %s135
      %p141 = scmp.eq.s32.totalorder %s16, 0
      %p142 = por %p140, %p141
      %p143 = scmp.ne.s32.totalorder %s132, %s135
      %p144 = scmp.eq.s32.totalorder %s21, 1
      %p145 = por %p143, %p144
      %p146 = scmp.ne.s32.totalorder %s135, %s136
      %p147 = scmp.eq.s32.totalorder %s21, 0
      %p148 = por %p146, %p147
      %p149 = scmp.ne.s32.totalorder %s135, %s136
      %p150 = scmp.eq.s32.totalorder %s22, 1
      %p151 = por %p149, %p150
      %p153 = scmp.ne.s32.totalorder %s136, %s152
      %p154 = scmp.eq.s32.totalorder %s22, 0
      %p155 = por %p153, %p154
      %s156 = ssub.s32 %s24, %s31
      %p157 = scmp.eq.s32.totalorder %s156, 0
      %s159 = sadd.s32 %s158, 1
      %s160 = scalar_select %p157, %s158, %s159
      %p163 = pneg %p157
      %p164 = scmp.eq.s32.totalorder %s16, 1
      %p165 = por %p163, %p164
      %p166 = scmp.ne.s32.totalorder %s158, %s161
      %p167 = scmp.eq.s32.totalorder %s16, 0
      %p168 = por %p166, %p167
      %p169 = scmp.ne.s32.totalorder %s158, %s161
      %p170 = scmp.eq.s32.totalorder %s21, 1
      %p171 = por %p169, %p170
      %p172 = scmp.ne.s32.totalorder %s161, %s162
      %p173 = scmp.eq.s32.totalorder %s21, 0
      %p174 = por %p172, %p173
      %p175 = scmp.ne.s32.totalorder %s161, %s162
      %p176 = scmp.eq.s32.totalorder %s22, 1
      %p177 = por %p175, %p176
      %p179 = scmp.ne.s32.totalorder %s162, %s178
      %p180 = scmp.eq.s32.totalorder %s22, 0
      %p181 = por %p179, %p180
      %s183 = sadd.s32 %s182, 1
      %p186 = scmp.eq.s32.totalorder %s16, 1
      %p187 = scmp.ne.s32.totalorder %s182, %s184
      %p188 = scmp.eq.s32.totalorder %s16, 0
      %p189 = por %p187, %p188
      %p190 = scmp.ne.s32.totalorder %s182, %s184
      %p191 = scmp.eq.s32.totalorder %s21, 1
      %p192 = por %p190, %p191
      %p193 = scmp.ne.s32.totalorder %s184, %s185
      %p194 = scmp.eq.s32.totalorder %s21, 0
      %p195 = por %p193, %p194
      %p196 = scmp.ne.s32.totalorder %s184, %s185
      %p197 = scmp.eq.s32.totalorder %s22, 1
      %p198 = por %p196, %p197
      %p200 = scmp.ne.s32.totalorder %s185, %s199
      %p201 = scmp.eq.s32.totalorder %s22, 0
      %p202 = por %p200, %p201
      %s203 = ssub.s32 %s23, %s35
      %p204 = scmp.eq.s32.totalorder %s203, 0
      %s206 = sadd.s32 %s205, 1
      %s207 = scalar_select %p204, %s205, %s206
      %p210 = pneg %p204
      %p211 = scmp.eq.s32.totalorder %s16, 1
      %p212 = por %p210, %p211
      %p213 = scmp.ne.s32.totalorder %s205, %s208
      %p214 = scmp.eq.s32.totalorder %s16, 0
      %p215 = por %p213, %p214
      %p216 = scmp.ne.s32.totalorder %s205, %s208
      %p217 = scmp.eq.s32.totalorder %s21, 1
      %p218 = por %p216, %p217
      %p219 = scmp.ne.s32.totalorder %s208, %s209
      %p220 = scmp.eq.s32.totalorder %s21, 0
      %p221 = por %p219, %p220
      %p222 = scmp.ne.s32.totalorder %s208, %s209
      %p223 = scmp.eq.s32.totalorder %s22, 1
      %p224 = por %p222, %p223
      %p226 = scmp.ne.s32.totalorder %s209, %s225
      %p227 = scmp.eq.s32.totalorder %s22, 0
      %p228 = por %p226, %p227
      %p229 = scmp.le.s32.totalorder 1, %s16
      %p230 = scmp.lt.s32.totalorder %s16, 3
      %p231 = pnand %p229, %p230
      %p232 = pneg %p231
      // Predicated region
      $region9: #{positionwise_ffn.1} parent=5 // pred_check
        _
      $region10: #{positionwise_ffn.1} parent=5 // pred_check_branch
        %234 = sbr.rel (%p231) target = $region12
      $region11: #{positionwise_ffn.1} parent=5 // pred_region
        %s235 = ssub.s32 %s16, 1
        // Predicated region
        $region13: #{positionwise_ffn.1} parent=11 // pred_check
          %p236 = pneg %p75
        $region14: #{positionwise_ffn.1} parent=11 // pred_check_branch
          %238 = sbr.rel (%p236) target = $region16
        $region15: #{positionwise_ffn.1} parent=11 // pred_region
          _
        $region16: #{positionwise_ffn.1} parent=11 // pred_fallthru
          _
        // Predicated region
        $region17: #{positionwise_ffn.1} parent=11 // pred_check
          %p239 = pneg %p96
        $region18: #{positionwise_ffn.1} parent=11 // pred_check_branch
          %241 = sbr.rel (%p239) target = $region20
        $region19: #{positionwise_ffn.1} parent=11 // pred_region
          _
        $region20: #{positionwise_ffn.1} parent=11 // pred_fallthru
          _
        // Predicated region
        $region21: #{positionwise_ffn.1} parent=11 // pred_check
          %p242 = pneg %p122
        $region22: #{positionwise_ffn.1} parent=11 // pred_check_branch
          %244 = sbr.rel (%p242) target = $region24
        $region23: #{positionwise_ffn.1} parent=11 // pred_region
          %p245 = scmp.lt.s32.totalorder %s26, 0
          %s246 = scalar_select %p245, %s26, 0
          %s247 = smul.addr %s246, 32
          %s248 = smul.addr %s247, 4
          %s249 = scalar_lea.vmem %s3, %s248
        $region24: #{positionwise_ffn.1} parent=11 // pred_fallthru
          _
        // Predicated region
        $region25: #{positionwise_ffn.1} parent=11 // pred_check
          %p250 = pneg %p148
        $region26: #{positionwise_ffn.1} parent=11 // pred_check_branch
          %252 = sbr.rel (%p250) target = $region28
        $region27: #{positionwise_ffn.1} parent=11 // pred_region
          %s253 = smul.u32 2, %s26
          %p254 = scmp.lt.s32.totalorder %s253, 1
          %s255 = scalar_select %p254, %s253, 1
          %s256 = scalar_lea.vmem %s4, %s255
          %s257 = smul.u32 2, %s26
        $region28: #{positionwise_ffn.1} parent=11 // pred_fallthru
          _
        // Predicated region
        $region29: #{positionwise_ffn.1} parent=11 // pred_check
          %p258 = pneg %p174
        $region30: #{positionwise_ffn.1} parent=11 // pred_check_branch
          %260 = sbr.rel (%p258) target = $region32
        $region31: #{positionwise_ffn.1} parent=11 // pred_region
          %s261 = smul.u32 32, %s26
          %p262 = scmp.lt.s32.totalorder %s261, 31
          %s263 = scalar_select %p262, %s261, 31
          %s264 = smul.addr %s263, 4
          %s265 = scalar_lea.vmem %s5, %s264
          %s266 = smul.u32 32, %s26
        $region32: #{positionwise_ffn.1} parent=11 // pred_fallthru
          _
        // Predicated region
        $region33: #{positionwise_ffn.1} parent=11 // pred_check
          %p267 = pneg %p195
        $region34: #{positionwise_ffn.1} parent=11 // pred_check_branch
          %269 = sbr.rel (%p267) target = $region36
        $region35: #{positionwise_ffn.1} parent=11 // pred_region
          _
        $region36: #{positionwise_ffn.1} parent=11 // pred_fallthru
          _
      $region12: #{positionwise_ffn.1} parent=5 // pred_fallthru
        _
      %p270 = scmp.lt.s32.totalorder %s16, 2
      // Predicated region
      $region37: #{positionwise_ffn.1} parent=5 // pred_check
        %p271 = pneg %p270
      $region38: #{positionwise_ffn.1} parent=5 // pred_check_branch
        %273 = sbr.rel (%p271) target = $region40
      $region39: #{positionwise_ffn.1} parent=5 // pred_region
        // Predicated region
        $region41: #{positionwise_ffn.1} parent=39 // pred_check
          %p274 = pneg %p48
        $region42: #{positionwise_ffn.1} parent=39 // pred_check_branch
          %276 = sbr.rel (%p274) target = $region44
        $region43: #{positionwise_ffn.1} parent=39 // pred_region
          %s277 = smul.u32 32, %s23
          %p278 = scmp.lt.s32.totalorder %s277, 63
          %s279 = scalar_select %p278, %s277, 63
          %s280 = smul.addr %s279, 8
          %s281 = scalar_lea.vmem %s0, %s280
          %s282 = smul.u32 32, %s23
        $region44: #{positionwise_ffn.1} parent=39 // pred_fallthru
          _
      $region40: #{positionwise_ffn.1} parent=5 // pred_fallthru
        _
      %p283 = scmp.le.s32.totalorder 1, %s16
      %p284 = scmp.lt.s32.totalorder %s16, 3
      %p285 = pnand %p283, %p284
      %p286 = pneg %p285
      // Predicated region
      $region45: #{positionwise_ffn.1} parent=5 // pred_check
        _
      $region46: #{positionwise_ffn.1} parent=5 // pred_check_branch
        %288 = sbr.rel (%p285) target = $region48
      $region47: #{positionwise_ffn.1} parent=5 // pred_region
        %s289 = ssub.s32 %s16, 1
        %s290 = smul.u32 32, %s25
        %p291 = scmp.lt.s32.totalorder %s290, 63
        %s292 = scalar_select %p291, %s290, 63
        %s293 = smul.addr %s292, 8
        %s294 = scalar_lea.vmem %s0, %s293
        %p295 = pneg %p54
        %p296 = pneg %p51
        %p297 = pneg %p75
        %p298 = pneg %p72
        %p299 = pneg %p96
        %p300 = pneg %p93
        %p301 = scmp.lt.s32.totalorder %s26, 0
        %s302 = scalar_select %p301, %s26, 0
        %s303 = smul.addr %s302, 32
        %s304 = smul.addr %s303, 4
        %s305 = scalar_lea.vmem %s3, %s304
        %p306 = pneg %p122
        %p307 = pneg %p119
        %s308 = smul.u32 2, %s26
        %p309 = scmp.lt.s32.totalorder %s308, 1
        %s310 = scalar_select %p309, %s308, 1
        %s311 = scalar_lea.vmem %s4, %s310
        %p312 = pneg %p148
        %p313 = pneg %p145
        %s314 = smul.u32 32, %s26
        %p315 = scmp.lt.s32.totalorder %s314, 31
        %s316 = scalar_select %p315, %s314, 31
        %s317 = smul.addr %s316, 4
        %s318 = scalar_lea.vmem %s5, %s317
        %p319 = pneg %p174
        %p320 = pneg %p171
        %p321 = pneg %p195
        %p322 = pneg %p192
        %p323 = pneg %p221
        %p324 = pneg %p218
        %s325 = sand.u32 %s208, 1
        %s326 = scalar_lea.sflag [#allocation4], %s325
        %s327 = sand.u32 %s208, 1
        %s328 = smul.addr %s327, 256
        %s329 = scalar_lea.vmem [#allocation3], %s328
        %s330 = smul.u32 32, %s25
        %p331 = scmp.lt.s32.totalorder %s330, 63
        %s332 = scalar_select %p331, %s330, 63
        %s333 = smul.addr %s332, 8
        %s334 = scalar_lea.vmem %s0, %s333
        %s335 = smul.u32 32, %s25
        %p336 = scmp.lt.s32.totalorder %s26, 0
        %s337 = scalar_select %p336, %s26, 0
        %s338 = smul.addr %s337, 32
        %s339 = smul.addr %s338, 4
        %s340 = scalar_lea.vmem %s3, %s339
        %s341 = smul.u32 2, %s26
        %p342 = scmp.lt.s32.totalorder %s341, 1
        %s343 = scalar_select %p342, %s341, 1
        %s344 = scalar_lea.vmem %s4, %s343
        %s345 = smul.u32 2, %s26
        %s346 = smul.u32 32, %s26
        %p347 = scmp.lt.s32.totalorder %s346, 31
        %s348 = scalar_select %p347, %s346, 31
        %s349 = smul.addr %s348, 4
        %s350 = scalar_lea.vmem %s5, %s349
        %s351 = smul.u32 32, %s26
        %s352 = smul.u32 32, %s25
        %p354 = scmp.eq.s32.totalorder %s26, 0
        // Predicated region
        $region49: #{positionwise_ffn.1} parent=47 // pred_check
          %p355 = pneg %p354
        $region50: #{positionwise_ffn.1} parent=47 // pred_check_branch
          %357 = sbr.rel (%p355) target = $region52
        $region51: #{positionwise_ffn.1} parent=47 // pred_region
          %v358 = vld [vmem:[%s334] sm:$0xff]
          %v359 = vld [vmem:[%s334 + $0x8] sm:$0xff]
          %v360 = vld [vmem:[%s334 + $0x10] sm:$0xff]
          %v361 = vld [vmem:[%s334 + $0x18] sm:$0xff]
          %v362 = vld [vmem:[%s334 + $0x20] sm:$0xff]
          %v363 = vld [vmem:[%s334 + $0x28] sm:$0xff]
          %v364 = vld [vmem:[%s334 + $0x30] sm:$0xff]
          %v365 = vld [vmem:[%s334 + $0x38] sm:$0xff]
          %v366 = vld [vmem:[%s334 + $0x40] sm:$0xff]
          %v367 = vld [vmem:[%s334 + $0x48] sm:$0xff]
          %v368 = vld [vmem:[%s334 + $0x50] sm:$0xff]
          %v369 = vld [vmem:[%s334 + $0x58] sm:$0xff]
          %v370 = vld [vmem:[%s334 + $0x60] sm:$0xff]
          %v371 = vld [vmem:[%s334 + $0x68] sm:$0xff]
          %v372 = vld [vmem:[%s334 + $0x70] sm:$0xff]
          %v373 = vld [vmem:[%s334 + $0x78] sm:$0xff]
          %v374 = vld [vmem:[%s334 + $0x80] sm:$0xff]
          %v375 = vld [vmem:[%s334 + $0x88] sm:$0xff]
          %v376 = vld [vmem:[%s334 + $0x90] sm:$0xff]
          %v377 = vld [vmem:[%s334 + $0x98] sm:$0xff]
          %v378 = vld [vmem:[%s334 + $0xa0] sm:$0xff]
          %v379 = vld [vmem:[%s334 + $0xa8] sm:$0xff]
          %v380 = vld [vmem:[%s334 + $0xb0] sm:$0xff]
          %v381 = vld [vmem:[%s334 + $0xb8] sm:$0xff]
          %v382 = vld [vmem:[%s334 + $0xc0] sm:$0xff]
          %v383 = vld [vmem:[%s334 + $0xc8] sm:$0xff]
          %v384 = vld [vmem:[%s334 + $0xd0] sm:$0xff]
          %v385 = vld [vmem:[%s334 + $0xd8] sm:$0xff]
          %v386 = vld [vmem:[%s334 + $0xe0] sm:$0xff]
          %v387 = vld [vmem:[%s334 + $0xe8] sm:$0xff]
          %v388 = vld [vmem:[%s334 + $0xf0] sm:$0xff]
          %v389 = vld [vmem:[%s334 + $0xf8] sm:$0xff]
          %390 = vadd.xlane.f32.xlu0 %v358
          %v391 = vpop.xlane.xlu0 %390
          %392 = vadd.xlane.f32.xlu0 %v359
          %v393 = vpop.xlane.xlu0 %392
          %394 = vadd.xlane.f32.xlu0 %v360
          %v395 = vpop.xlane.xlu0 %394
          %396 = vadd.xlane.f32.xlu0 %v361
          %v397 = vpop.xlane.xlu0 %396
          %398 = vadd.xlane.f32.xlu0 %v362
          %v399 = vpop.xlane.xlu0 %398
          %400 = vadd.xlane.f32.xlu0 %v363
          %v401 = vpop.xlane.xlu0 %400
          %402 = vadd.xlane.f32.xlu0 %v364
          %v403 = vpop.xlane.xlu0 %402
          %404 = vadd.xlane.f32.xlu0 %v365
          %v405 = vpop.xlane.xlu0 %404
          %406 = vadd.xlane.f32.xlu0 %v366
          %v407 = vpop.xlane.xlu0 %406
          %408 = vadd.xlane.f32.xlu0 %v367
          %v409 = vpop.xlane.xlu0 %408
          %410 = vadd.xlane.f32.xlu0 %v368
          %v411 = vpop.xlane.xlu0 %410
          %412 = vadd.xlane.f32.xlu0 %v369
          %v413 = vpop.xlane.xlu0 %412
          %414 = vadd.xlane.f32.xlu0 %v370
          %v415 = vpop.xlane.xlu0 %414
          %416 = vadd.xlane.f32.xlu0 %v371
          %v417 = vpop.xlane.xlu0 %416
          %418 = vadd.xlane.f32.xlu0 %v372
          %v419 = vpop.xlane.xlu0 %418
          %420 = vadd.xlane.f32.xlu0 %v373
          %v421 = vpop.xlane.xlu0 %420
          %422 = vadd.xlane.f32.xlu0 %v374
          %v423 = vpop.xlane.xlu0 %422
          %424 = vadd.xlane.f32.xlu0 %v375
          %v425 = vpop.xlane.xlu0 %424
          %426 = vadd.xlane.f32.xlu0 %v376
          %v427 = vpop.xlane.xlu0 %426
          %428 = vadd.xlane.f32.xlu0 %v377
          %v429 = vpop.xlane.xlu0 %428
          %430 = vadd.xlane.f32.xlu0 %v378
          %v431 = vpop.xlane.xlu0 %430
          %432 = vadd.xlane.f32.xlu0 %v379
          %v433 = vpop.xlane.xlu0 %432
          %434 = vadd.xlane.f32.xlu0 %v380
          %v435 = vpop.xlane.xlu0 %434
          %436 = vadd.xlane.f32.xlu0 %v381
          %v437 = vpop.xlane.xlu0 %436
          %438 = vadd.xlane.f32.xlu0 %v382
          %v439 = vpop.xlane.xlu0 %438
          %440 = vadd.xlane.f32.xlu0 %v383
          %v441 = vpop.xlane.xlu0 %440
          %442 = vadd.xlane.f32.xlu0 %v384
          %v443 = vpop.xlane.xlu0 %442
          %444 = vadd.xlane.f32.xlu0 %v385
          %v445 = vpop.xlane.xlu0 %444
          %446 = vadd.xlane.f32.xlu0 %v386
          %v447 = vpop.xlane.xlu0 %446
          %448 = vadd.xlane.f32.xlu0 %v387
          %v449 = vpop.xlane.xlu0 %448
          %450 = vadd.xlane.f32.xlu0 %v388
          %v451 = vpop.xlane.xlu0 %450
          %452 = vadd.xlane.f32.xlu0 %v389
          %v453 = vpop.xlane.xlu0 %452
          %v454 = vrcp.pop 128.0
          %v455 = vmul.f32 %v391, %v454
          %v456 = vmul.f32 %v393, %v454
          %v457 = vmul.f32 %v395, %v454
          %v458 = vmul.f32 %v397, %v454
          %v459 = vmul.f32 %v399, %v454
          %v460 = vmul.f32 %v401, %v454
          %v461 = vmul.f32 %v403, %v454
          %v462 = vmul.f32 %v405, %v454
          %v463 = vmul.f32 %v407, %v454
          %v464 = vmul.f32 %v409, %v454
          %v465 = vmul.f32 %v411, %v454
          %v466 = vmul.f32 %v413, %v454
          %v467 = vmul.f32 %v415, %v454
          %v468 = vmul.f32 %v417, %v454
          %v469 = vmul.f32 %v419, %v454
          %v470 = vmul.f32 %v421, %v454
          %v471 = vmul.f32 %v423, %v454
          %v472 = vmul.f32 %v425, %v454
          %v473 = vmul.f32 %v427, %v454
          %v474 = vmul.f32 %v429, %v454
          %v475 = vmul.f32 %v431, %v454
          %v476 = vmul.f32 %v433, %v454
          %v477 = vmul.f32 %v435, %v454
          %v478 = vmul.f32 %v437, %v454
          %v479 = vmul.f32 %v439, %v454
          %v480 = vmul.f32 %v441, %v454
          %v481 = vmul.f32 %v443, %v454
          %v482 = vmul.f32 %v445, %v454
          %v483 = vmul.f32 %v447, %v454
          %v484 = vmul.f32 %v449, %v454
          %v485 = vmul.f32 %v451, %v454
          %v486 = vmul.f32 %v453, %v454
          %v487 = vsub.f32 %v358, %v455
          %v488 = vsub.f32 %v359, %v456
          %v489 = vsub.f32 %v360, %v457
          %v490 = vsub.f32 %v361, %v458
          %v491 = vsub.f32 %v362, %v459
          %v492 = vsub.f32 %v363, %v460
          %v493 = vsub.f32 %v364, %v461
          %v494 = vsub.f32 %v365, %v462
          %v495 = vsub.f32 %v366, %v463
          %v496 = vsub.f32 %v367, %v464
          %v497 = vsub.f32 %v368, %v465
          %v498 = vsub.f32 %v369, %v466
          %v499 = vsub.f32 %v370, %v467
          %v500 = vsub.f32 %v371, %v468
          %v501 = vsub.f32 %v372, %v469
          %v502 = vsub.f32 %v373, %v470
          %v503 = vsub.f32 %v374, %v471
          %v504 = vsub.f32 %v375, %v472
          %v505 = vsub.f32 %v376, %v473
          %v506 = vsub.f32 %v377, %v474
          %v507 = vsub.f32 %v378, %v475
          %v508 = vsub.f32 %v379, %v476
          %v509 = vsub.f32 %v380, %v477
          %v510 = vsub.f32 %v381, %v478
          %v511 = vsub.f32 %v382, %v479
          %v512 = vsub.f32 %v383, %v480
          %v513 = vsub.f32 %v384, %v481
          %v514 = vsub.f32 %v385, %v482
          %v515 = vsub.f32 %v386, %v483
          %v516 = vsub.f32 %v387, %v484
          %v517 = vsub.f32 %v388, %v485
          %v518 = vsub.f32 %v389, %v486
          %v519 = vmul.f32 %v487, %v487
          %v520 = vmul.f32 %v488, %v488
          %v521 = vmul.f32 %v489, %v489
          %v522 = vmul.f32 %v490, %v490
          %v523 = vmul.f32 %v491, %v491
          %v524 = vmul.f32 %v492, %v492
          %v525 = vmul.f32 %v493, %v493
          %v526 = vmul.f32 %v494, %v494
          %v527 = vmul.f32 %v495, %v495
          %v528 = vmul.f32 %v496, %v496
          %v529 = vmul.f32 %v497, %v497
          %v530 = vmul.f32 %v498, %v498
          %v531 = vmul.f32 %v499, %v499
          %v532 = vmul.f32 %v500, %v500
          %v533 = vmul.f32 %v501, %v501
          %v534 = vmul.f32 %v502, %v502
          %v535 = vmul.f32 %v503, %v503
          %v536 = vmul.f32 %v504, %v504
          %v537 = vmul.f32 %v505, %v505
          %v538 = vmul.f32 %v506, %v506
          %v539 = vmul.f32 %v507, %v507
          %v540 = vmul.f32 %v508, %v508
          %v541 = vmul.f32 %v509, %v509
          %v542 = vmul.f32 %v510, %v510
          %v543 = vmul.f32 %v511, %v511
          %v544 = vmul.f32 %v512, %v512
          %v545 = vmul.f32 %v513, %v513
          %v546 = vmul.f32 %v514, %v514
          %v547 = vmul.f32 %v515, %v515
          %v548 = vmul.f32 %v516, %v516
          %v549 = vmul.f32 %v517, %v517
          %v550 = vmul.f32 %v518, %v518
          %551 = vadd.xlane.f32.xlu0 %v519
          %v552 = vpop.xlane.xlu0 %551
          %553 = vadd.xlane.f32.xlu0 %v520
          %v554 = vpop.xlane.xlu0 %553
          %555 = vadd.xlane.f32.xlu0 %v521
          %v556 = vpop.xlane.xlu0 %555
          %557 = vadd.xlane.f32.xlu0 %v522
          %v558 = vpop.xlane.xlu0 %557
          %559 = vadd.xlane.f32.xlu0 %v523
          %v560 = vpop.xlane.xlu0 %559
          %561 = vadd.xlane.f32.xlu0 %v524
          %v562 = vpop.xlane.xlu0 %561
          %563 = vadd.xlane.f32.xlu0 %v525
          %v564 = vpop.xlane.xlu0 %563
          %565 = vadd.xlane.f32.xlu0 %v526
          %v566 = vpop.xlane.xlu0 %565
          %567 = vadd.xlane.f32.xlu0 %v527
          %v568 = vpop.xlane.xlu0 %567
          %569 = vadd.xlane.f32.xlu0 %v528
          %v570 = vpop.xlane.xlu0 %569
          %571 = vadd.xlane.f32.xlu0 %v529
          %v572 = vpop.xlane.xlu0 %571
          %573 = vadd.xlane.f32.xlu0 %v530
          %v574 = vpop.xlane.xlu0 %573
          %575 = vadd.xlane.f32.xlu0 %v531
          %v576 = vpop.xlane.xlu0 %575
          %577 = vadd.xlane.f32.xlu0 %v532
          %v578 = vpop.xlane.xlu0 %577
          %579 = vadd.xlane.f32.xlu0 %v533
          %v580 = vpop.xlane.xlu0 %579
          %581 = vadd.xlane.f32.xlu0 %v534
          %v582 = vpop.xlane.xlu0 %581
          %583 = vadd.xlane.f32.xlu0 %v535
          %v584 = vpop.xlane.xlu0 %583
          %585 = vadd.xlane.f32.xlu0 %v536
          %v586 = vpop.xlane.xlu0 %585
          %587 = vadd.xlane.f32.xlu0 %v537
          %v588 = vpop.xlane.xlu0 %587
          %589 = vadd.xlane.f32.xlu0 %v538
          %v590 = vpop.xlane.xlu0 %589
          %591 = vadd.xlane.f32.xlu0 %v539
          %v592 = vpop.xlane.xlu0 %591
          %593 = vadd.xlane.f32.xlu0 %v540
          %v594 = vpop.xlane.xlu0 %593
          %595 = vadd.xlane.f32.xlu0 %v541
          %v596 = vpop.xlane.xlu0 %595
          %597 = vadd.xlane.f32.xlu0 %v542
          %v598 = vpop.xlane.xlu0 %597
          %599 = vadd.xlane.f32.xlu0 %v543
          %v600 = vpop.xlane.xlu0 %599
          %601 = vadd.xlane.f32.xlu0 %v544
          %v602 = vpop.xlane.xlu0 %601
          %603 = vadd.xlane.f32.xlu0 %v545
          %v604 = vpop.xlane.xlu0 %603
          %605 = vadd.xlane.f32.xlu0 %v546
          %v606 = vpop.xlane.xlu0 %605
          %607 = vadd.xlane.f32.xlu0 %v547
          %v608 = vpop.xlane.xlu0 %607
          %609 = vadd.xlane.f32.xlu0 %v548
          %v610 = vpop.xlane.xlu0 %609
          %611 = vadd.xlane.f32.xlu0 %v549
          %v612 = vpop.xlane.xlu0 %611
          %613 = vadd.xlane.f32.xlu0 %v550
          %v614 = vpop.xlane.xlu0 %613
          %v615 = vmul.f32 %v552, %v454
          %v616 = vmul.f32 %v554, %v454
          %v617 = vmul.f32 %v556, %v454
          %v618 = vmul.f32 %v558, %v454
          %v619 = vmul.f32 %v560, %v454
          %v620 = vmul.f32 %v562, %v454
          %v621 = vmul.f32 %v564, %v454
          %v622 = vmul.f32 %v566, %v454
          %v623 = vmul.f32 %v568, %v454
          %v624 = vmul.f32 %v570, %v454
          %v625 = vmul.f32 %v572, %v454
          %v626 = vmul.f32 %v574, %v454
          %v627 = vmul.f32 %v576, %v454
          %v628 = vmul.f32 %v578, %v454
          %v629 = vmul.f32 %v580, %v454
          %v630 = vmul.f32 %v582, %v454
          %v631 = vmul.f32 %v584, %v454
          %v632 = vmul.f32 %v586, %v454
          %v633 = vmul.f32 %v588, %v454
          %v634 = vmul.f32 %v590, %v454
          %v635 = vmul.f32 %v592, %v454
          %v636 = vmul.f32 %v594, %v454
          %v637 = vmul.f32 %v596, %v454
          %v638 = vmul.f32 %v598, %v454
          %v639 = vmul.f32 %v600, %v454
          %v640 = vmul.f32 %v602, %v454
          %v641 = vmul.f32 %v604, %v454
          %v642 = vmul.f32 %v606, %v454
          %v643 = vmul.f32 %v608, %v454
          %v644 = vmul.f32 %v610, %v454
          %v645 = vmul.f32 %v612, %v454
          %v646 = vmul.f32 %v614, %v454
          %v647 = vadd.f32 %v615, 1e-05
          %v648 = vadd.f32 %v616, 1e-05
          %v649 = vadd.f32 %v617, 1e-05
          %v650 = vadd.f32 %v618, 1e-05
          %v651 = vadd.f32 %v619, 1e-05
          %v652 = vadd.f32 %v620, 1e-05
          %v653 = vadd.f32 %v621, 1e-05
          %v654 = vadd.f32 %v622, 1e-05
          %v655 = vadd.f32 %v623, 1e-05
          %v656 = vadd.f32 %v624, 1e-05
          %v657 = vadd.f32 %v625, 1e-05
          %v658 = vadd.f32 %v626, 1e-05
          %v659 = vadd.f32 %v627, 1e-05
          %v660 = vadd.f32 %v628, 1e-05
          %v661 = vadd.f32 %v629, 1e-05
          %v662 = vadd.f32 %v630, 1e-05
          %v663 = vadd.f32 %v631, 1e-05
          %v664 = vadd.f32 %v632, 1e-05
          %v665 = vadd.f32 %v633, 1e-05
          %v666 = vadd.f32 %v634, 1e-05
          %v667 = vadd.f32 %v635, 1e-05
          %v668 = vadd.f32 %v636, 1e-05
          %v669 = vadd.f32 %v637, 1e-05
          %v670 = vadd.f32 %v638, 1e-05
          %v671 = vadd.f32 %v639, 1e-05
          %v672 = vadd.f32 %v640, 1e-05
          %v673 = vadd.f32 %v641, 1e-05
          %v674 = vadd.f32 %v642, 1e-05
          %v675 = vadd.f32 %v643, 1e-05
          %v676 = vadd.f32 %v644, 1e-05
          %v677 = vadd.f32 %v645, 1e-05
          %v678 = vadd.f32 %v646, 1e-05
          %v679 = vrsqrt.pop %v647
          %v680 = vrsqrt.pop %v648
          %v681 = vrsqrt.pop %v649
          %v682 = vrsqrt.pop %v650
          %v683 = vrsqrt.pop %v651
          %v684 = vrsqrt.pop %v652
          %v685 = vrsqrt.pop %v653
          %v686 = vrsqrt.pop %v654
          %v687 = vrsqrt.pop %v655
          %v688 = vrsqrt.pop %v656
          %v689 = vrsqrt.pop %v657
          %v690 = vrsqrt.pop %v658
          %v691 = vrsqrt.pop %v659
          %v692 = vrsqrt.pop %v660
          %v693 = vrsqrt.pop %v661
          %v694 = vrsqrt.pop %v662
          %v695 = vrsqrt.pop %v663
          %v696 = vrsqrt.pop %v664
          %v697 = vrsqrt.pop %v665
          %v698 = vrsqrt.pop %v666
          %v699 = vrsqrt.pop %v667
          %v700 = vrsqrt.pop %v668
          %v701 = vrsqrt.pop %v669
          %v702 = vrsqrt.pop %v670
          %v703 = vrsqrt.pop %v671
          %v704 = vrsqrt.pop %v672
          %v705 = vrsqrt.pop %v673
          %v706 = vrsqrt.pop %v674
          %v707 = vrsqrt.pop %v675
          %v708 = vrsqrt.pop %v676
          %v709 = vrsqrt.pop %v677
          %v710 = vrsqrt.pop %v678
          %v711 = vmul.f32 %v487, %v679
          %v712 = vmul.f32 %v488, %v680
          %v713 = vmul.f32 %v489, %v681
          %v714 = vmul.f32 %v490, %v682
          %v715 = vmul.f32 %v491, %v683
          %v716 = vmul.f32 %v492, %v684
          %v717 = vmul.f32 %v493, %v685
          %v718 = vmul.f32 %v494, %v686
          %v719 = vmul.f32 %v495, %v687
          %v720 = vmul.f32 %v496, %v688
          %v721 = vmul.f32 %v497, %v689
          %v722 = vmul.f32 %v498, %v690
          %v723 = vmul.f32 %v499, %v691
          %v724 = vmul.f32 %v500, %v692
          %v725 = vmul.f32 %v501, %v693
          %v726 = vmul.f32 %v502, %v694
          %v727 = vmul.f32 %v503, %v695
          %v728 = vmul.f32 %v504, %v696
          %v729 = vmul.f32 %v505, %v697
          %v730 = vmul.f32 %v506, %v698
          %v731 = vmul.f32 %v507, %v699
          %v732 = vmul.f32 %v508, %v700
          %v733 = vmul.f32 %v509, %v701
          %v734 = vmul.f32 %v510, %v702
          %v735 = vmul.f32 %v511, %v703
          %v736 = vmul.f32 %v512, %v704
          %v737 = vmul.f32 %v513, %v705
          %v738 = vmul.f32 %v514, %v706
          %v739 = vmul.f32 %v515, %v707
          %v740 = vmul.f32 %v516, %v708
          %v741 = vmul.f32 %v517, %v709
          %v742 = vmul.f32 %v518, %v710
          %v743 = vld [vmem:[%s1] sm:$0x1]
          %v745 = vlaneseq
          %v746 = vshrl.u32 %v745, 7
          %v747 = vsub.s32 0, %v746
          %v748 = vrot.slane %v743, %v747
          %v750 = vmul.f32 %v711, %v748
          %v751 = vmul.f32 %v712, %v748
          %v752 = vmul.f32 %v713, %v748
          %v753 = vmul.f32 %v714, %v748
          %v754 = vmul.f32 %v715, %v748
          %v755 = vmul.f32 %v716, %v748
          %v756 = vmul.f32 %v717, %v748
          %v757 = vmul.f32 %v718, %v748
          %v758 = vmul.f32 %v719, %v748
          %v759 = vmul.f32 %v720, %v748
          %v760 = vmul.f32 %v721, %v748
          %v761 = vmul.f32 %v722, %v748
          %v762 = vmul.f32 %v723, %v748
          %v763 = vmul.f32 %v724, %v748
          %v764 = vmul.f32 %v725, %v748
          %v765 = vmul.f32 %v726, %v748
          %v766 = vmul.f32 %v727, %v748
          %v767 = vmul.f32 %v728, %v748
          %v768 = vmul.f32 %v729, %v748
          %v769 = vmul.f32 %v730, %v748
          %v770 = vmul.f32 %v731, %v748
          %v771 = vmul.f32 %v732, %v748
          %v772 = vmul.f32 %v733, %v748
          %v773 = vmul.f32 %v734, %v748
          %v774 = vmul.f32 %v735, %v748
          %v775 = vmul.f32 %v736, %v748
          %v776 = vmul.f32 %v737, %v748
          %v777 = vmul.f32 %v738, %v748
          %v778 = vmul.f32 %v739, %v748
          %v779 = vmul.f32 %v740, %v748
          %v780 = vmul.f32 %v741, %v748
          %v781 = vmul.f32 %v742, %v748
          %v782 = vld [vmem:[%s2] sm:$0x1]
          %v784 = vlaneseq
          %v785 = vshrl.u32 %v784, 7
          %v786 = vsub.s32 0, %v785
          %v787 = vrot.slane %v782, %v786
          %v789 = vadd.f32 %v750, %v787
          %v790 = vadd.f32 %v751, %v787
          %v791 = vadd.f32 %v752, %v787
          %v792 = vadd.f32 %v753, %v787
          %v793 = vadd.f32 %v754, %v787
          %v794 = vadd.f32 %v755, %v787
          %v795 = vadd.f32 %v756, %v787
          %v796 = vadd.f32 %v757, %v787
          %v797 = vadd.f32 %v758, %v787
          %v798 = vadd.f32 %v759, %v787
          %v799 = vadd.f32 %v760, %v787
          %v800 = vadd.f32 %v761, %v787
          %v801 = vadd.f32 %v762, %v787
          %v802 = vadd.f32 %v763, %v787
          %v803 = vadd.f32 %v764, %v787
          %v804 = vadd.f32 %v765, %v787
          %v805 = vadd.f32 %v766, %v787
          %v806 = vadd.f32 %v767, %v787
          %v807 = vadd.f32 %v768, %v787
          %v808 = vadd.f32 %v769, %v787
          %v809 = vadd.f32 %v770, %v787
          %v810 = vadd.f32 %v771, %v787
          %v811 = vadd.f32 %v772, %v787
          %v812 = vadd.f32 %v773, %v787
          %v813 = vadd.f32 %v774, %v787
          %v814 = vadd.f32 %v775, %v787
          %v815 = vadd.f32 %v776, %v787
          %v816 = vadd.f32 %v777, %v787
          %v817 = vadd.f32 %v778, %v787
          %v818 = vadd.f32 %v779, %v787
          %v819 = vadd.f32 %v780, %v787
          %v820 = vadd.f32 %v781, %v787
          %v821 = vpack.c.bf16 %v790, %v789
          %v822 = vpack.c.bf16 %v792, %v791
          %v823 = vpack.c.bf16 %v794, %v793
          %v824 = vpack.c.bf16 %v796, %v795
          %v825 = vpack.c.bf16 %v798, %v797
          %v826 = vpack.c.bf16 %v800, %v799
          %v827 = vpack.c.bf16 %v802, %v801
          %v828 = vpack.c.bf16 %v804, %v803
          %v829 = vpack.c.bf16 %v806, %v805
          %v830 = vpack.c.bf16 %v808, %v807
          %v831 = vpack.c.bf16 %v810, %v809
          %v832 = vpack.c.bf16 %v812, %v811
          %v833 = vpack.c.bf16 %v814, %v813
          %v834 = vpack.c.bf16 %v816, %v815
          %v835 = vpack.c.bf16 %v818, %v817
          %v836 = vpack.c.bf16 %v820, %v819
          %v853 = vunpack.c.l.b16 %v821
          %v854 = vunpack.c.h.b16 %v821
          %v855 = vunpack.c.l.b16 %v822
          %v856 = vunpack.c.h.b16 %v822
          %v857 = vunpack.c.l.b16 %v823
          %v858 = vunpack.c.h.b16 %v823
          %v859 = vunpack.c.l.b16 %v824
          %v860 = vunpack.c.h.b16 %v824
          %v861 = vunpack.c.l.b16 %v825
          %v862 = vunpack.c.h.b16 %v825
          %v863 = vunpack.c.l.b16 %v826
          %v864 = vunpack.c.h.b16 %v826
          %v865 = vunpack.c.l.b16 %v827
          %v866 = vunpack.c.h.b16 %v827
          %v867 = vunpack.c.l.b16 %v828
          %v868 = vunpack.c.h.b16 %v828
          %v869 = vunpack.c.l.b16 %v829
          %v870 = vunpack.c.h.b16 %v829
          %v871 = vunpack.c.l.b16 %v830
          %v872 = vunpack.c.h.b16 %v830
          %v873 = vunpack.c.l.b16 %v831
          %v874 = vunpack.c.h.b16 %v831
          %v875 = vunpack.c.l.b16 %v832
          %v876 = vunpack.c.h.b16 %v832
          %v877 = vunpack.c.l.b16 %v833
          %v878 = vunpack.c.h.b16 %v833
          %v879 = vunpack.c.l.b16 %v834
          %v880 = vunpack.c.h.b16 %v834
          %v881 = vunpack.c.l.b16 %v835
          %v882 = vunpack.c.h.b16 %v835
          %v883 = vunpack.c.l.b16 %v836
          %v884 = vunpack.c.h.b16 %v836
          %v885 = vpack.c.b16 %v853, %v853
          %v886 = vpack.c.b16 %v854, %v854
          %v887 = vpack.c.b16 %v855, %v855
          %v888 = vpack.c.b16 %v856, %v856
          %v889 = vpack.c.b16 %v857, %v857
          %v890 = vpack.c.b16 %v858, %v858
          %v891 = vpack.c.b16 %v859, %v859
          %v892 = vpack.c.b16 %v860, %v860
          %v893 = vpack.c.b16 %v861, %v861
          %v894 = vpack.c.b16 %v862, %v862
          %v895 = vpack.c.b16 %v863, %v863
          %v896 = vpack.c.b16 %v864, %v864
          %v897 = vpack.c.b16 %v865, %v865
          %v898 = vpack.c.b16 %v866, %v866
          %v899 = vpack.c.b16 %v867, %v867
          %v900 = vpack.c.b16 %v868, %v868
          %v901 = vpack.c.b16 %v869, %v869
          %v902 = vpack.c.b16 %v870, %v870
          %v903 = vpack.c.b16 %v871, %v871
          %v904 = vpack.c.b16 %v872, %v872
          %v905 = vpack.c.b16 %v873, %v873
          %v906 = vpack.c.b16 %v874, %v874
          %v907 = vpack.c.b16 %v875, %v875
          %v908 = vpack.c.b16 %v876, %v876
          %v909 = vpack.c.b16 %v877, %v877
          %v910 = vpack.c.b16 %v878, %v878
          %v911 = vpack.c.b16 %v879, %v879
          %v912 = vpack.c.b16 %v880, %v880
          %v913 = vpack.c.b16 %v881, %v881
          %v914 = vpack.c.b16 %v882, %v882
          %v915 = vpack.c.b16 %v883, %v883
          %v916 = vpack.c.b16 %v884, %v884
          %949 = vst [vmem:[#allocation2] sm:$0xf] %v885
          %950 = vst [vmem:[#allocation2 + $0x4] sm:$0xf] %v886
          %951 = vst [vmem:[#allocation2 + $0x8] sm:$0xf] %v887
          %952 = vst [vmem:[#allocation2 + $0xc] sm:$0xf] %v888
          %953 = vst [vmem:[#allocation2 + $0x10] sm:$0xf] %v889
          %954 = vst [vmem:[#allocation2 + $0x14] sm:$0xf] %v890
          %955 = vst [vmem:[#allocation2 + $0x18] sm:$0xf] %v891
          %956 = vst [vmem:[#allocation2 + $0x1c] sm:$0xf] %v892
          %957 = vst [vmem:[#allocation2 + $0x20] sm:$0xf] %v893
          %958 = vst [vmem:[#allocation2 + $0x24] sm:$0xf] %v894
          %959 = vst [vmem:[#allocation2 + $0x28] sm:$0xf] %v895
          %960 = vst [vmem:[#allocation2 + $0x2c] sm:$0xf] %v896
          %961 = vst [vmem:[#allocation2 + $0x30] sm:$0xf] %v897
          %962 = vst [vmem:[#allocation2 + $0x34] sm:$0xf] %v898
          %963 = vst [vmem:[#allocation2 + $0x38] sm:$0xf] %v899
          %964 = vst [vmem:[#allocation2 + $0x3c] sm:$0xf] %v900
          %965 = vst [vmem:[#allocation2 + $0x40] sm:$0xf] %v901
          %966 = vst [vmem:[#allocation2 + $0x44] sm:$0xf] %v902
          %967 = vst [vmem:[#allocation2 + $0x48] sm:$0xf] %v903
          %968 = vst [vmem:[#allocation2 + $0x4c] sm:$0xf] %v904
          %969 = vst [vmem:[#allocation2 + $0x50] sm:$0xf] %v905
          %970 = vst [vmem:[#allocation2 + $0x54] sm:$0xf] %v906
          %971 = vst [vmem:[#allocation2 + $0x58] sm:$0xf] %v907
          %972 = vst [vmem:[#allocation2 + $0x5c] sm:$0xf] %v908
          %973 = vst [vmem:[#allocation2 + $0x60] sm:$0xf] %v909
          %974 = vst [vmem:[#allocation2 + $0x64] sm:$0xf] %v910
          %975 = vst [vmem:[#allocation2 + $0x68] sm:$0xf] %v911
          %976 = vst [vmem:[#allocation2 + $0x6c] sm:$0xf] %v912
          %977 = vst [vmem:[#allocation2 + $0x70] sm:$0xf] %v913
          %978 = vst [vmem:[#allocation2 + $0x74] sm:$0xf] %v914
          %979 = vst [vmem:[#allocation2 + $0x78] sm:$0xf] %v915
          %980 = vst [vmem:[#allocation2 + $0x7c] sm:$0xf] %v916
          %981 = vst [vmem:[%s329] sm:$0xff] 0.0
          %982 = vst [vmem:[%s329 + $0x8] sm:$0xff] 0.0
          %983 = vst [vmem:[%s329 + $0x10] sm:$0xff] 0.0
          %984 = vst [vmem:[%s329 + $0x18] sm:$0xff] 0.0
          %985 = vst [vmem:[%s329 + $0x20] sm:$0xff] 0.0
          %986 = vst [vmem:[%s329 + $0x28] sm:$0xff] 0.0
          %987 = vst [vmem:[%s329 + $0x30] sm:$0xff] 0.0
          %988 = vst [vmem:[%s329 + $0x38] sm:$0xff] 0.0
          %989 = vst [vmem:[%s329 + $0x40] sm:$0xff] 0.0
          %990 = vst [vmem:[%s329 + $0x48] sm:$0xff] 0.0
          %991 = vst [vmem:[%s329 + $0x50] sm:$0xff] 0.0
          %992 = vst [vmem:[%s329 + $0x58] sm:$0xff] 0.0
          %993 = vst [vmem:[%s329 + $0x60] sm:$0xff] 0.0
          %994 = vst [vmem:[%s329 + $0x68] sm:$0xff] 0.0
          %995 = vst [vmem:[%s329 + $0x70] sm:$0xff] 0.0
          %996 = vst [vmem:[%s329 + $0x78] sm:$0xff] 0.0
          %997 = vst [vmem:[%s329 + $0x80] sm:$0xff] 0.0
          %998 = vst [vmem:[%s329 + $0x88] sm:$0xff] 0.0
          %999 = vst [vmem:[%s329 + $0x90] sm:$0xff] 0.0
          %1000 = vst [vmem:[%s329 + $0x98] sm:$0xff] 0.0
          %1001 = vst [vmem:[%s329 + $0xa0] sm:$0xff] 0.0
          %1002 = vst [vmem:[%s329 + $0xa8] sm:$0xff] 0.0
          %1003 = vst [vmem:[%s329 + $0xb0] sm:$0xff] 0.0
          %1004 = vst [vmem:[%s329 + $0xb8] sm:$0xff] 0.0
          %1005 = vst [vmem:[%s329 + $0xc0] sm:$0xff] 0.0
          %1006 = vst [vmem:[%s329 + $0xc8] sm:$0xff] 0.0
          %1007 = vst [vmem:[%s329 + $0xd0] sm:$0xff] 0.0
          %1008 = vst [vmem:[%s329 + $0xd8] sm:$0xff] 0.0
          %1009 = vst [vmem:[%s329 + $0xe0] sm:$0xff] 0.0
          %1010 = vst [vmem:[%s329 + $0xe8] sm:$0xff] 0.0
          %1011 = vst [vmem:[%s329 + $0xf0] sm:$0xff] 0.0
          %1012 = vst [vmem:[%s329 + $0xf8] sm:$0xff] 0.0
        $region52: #{positionwise_ffn.1} parent=47 // pred_fallthru
          _
        %v1013 = vld [vmem:[#allocation2] sm:$0xf]
        %v1014 = vld [vmem:[#allocation2 + $0x4] sm:$0xf]
        %v1015 = vld [vmem:[#allocation2 + $0x8] sm:$0xf]
        %v1016 = vld [vmem:[#allocation2 + $0xc] sm:$0xf]
        %v1017 = vld [vmem:[#allocation2 + $0x10] sm:$0xf]
        %v1018 = vld [vmem:[#allocation2 + $0x14] sm:$0xf]
        %v1019 = vld [vmem:[#allocation2 + $0x18] sm:$0xf]
        %v1020 = vld [vmem:[#allocation2 + $0x1c] sm:$0xf]
        %v1021 = vld [vmem:[#allocation2 + $0x20] sm:$0xf]
        %v1022 = vld [vmem:[#allocation2 + $0x24] sm:$0xf]
        %v1023 = vld [vmem:[#allocation2 + $0x28] sm:$0xf]
        %v1024 = vld [vmem:[#allocation2 + $0x2c] sm:$0xf]
        %v1025 = vld [vmem:[#allocation2 + $0x30] sm:$0xf]
        %v1026 = vld [vmem:[#allocation2 + $0x34] sm:$0xf]
        %v1027 = vld [vmem:[#allocation2 + $0x38] sm:$0xf]
        %v1028 = vld [vmem:[#allocation2 + $0x3c] sm:$0xf]
        %v1029 = vld [vmem:[#allocation2 + $0x40] sm:$0xf]
        %v1030 = vld [vmem:[#allocation2 + $0x44] sm:$0xf]
        %v1031 = vld [vmem:[#allocation2 + $0x48] sm:$0xf]
        %v1032 = vld [vmem:[#allocation2 + $0x4c] sm:$0xf]
        %v1033 = vld [vmem:[#allocation2 + $0x50] sm:$0xf]
        %v1034 = vld [vmem:[#allocation2 + $0x54] sm:$0xf]
        %v1035 = vld [vmem:[#allocation2 + $0x58] sm:$0xf]
        %v1036 = vld [vmem:[#allocation2 + $0x5c] sm:$0xf]
        %v1037 = vld [vmem:[#allocation2 + $0x60] sm:$0xf]
        %v1038 = vld [vmem:[#allocation2 + $0x64] sm:$0xf]
        %v1039 = vld [vmem:[#allocation2 + $0x68] sm:$0xf]
        %v1040 = vld [vmem:[#allocation2 + $0x6c] sm:$0xf]
        %v1041 = vld [vmem:[#allocation2 + $0x70] sm:$0xf]
        %v1042 = vld [vmem:[#allocation2 + $0x74] sm:$0xf]
        %v1043 = vld [vmem:[#allocation2 + $0x78] sm:$0xf]
        %v1044 = vld [vmem:[#allocation2 + $0x7c] sm:$0xf]
        %v1045 = vld [vmem:[%s340] sm:$0xff]
        %v1046 = vld [vmem:[%s340 + $0x8] sm:$0xff]
        %v1047 = vld [vmem:[%s340 + $0x10] sm:$0xff]
        %v1048 = vld [vmem:[%s340 + $0x18] sm:$0xff]
        %v1049 = vld [vmem:[%s340 + $0x20] sm:$0xff]
        %v1050 = vld [vmem:[%s340 + $0x28] sm:$0xff]
        %v1051 = vld [vmem:[%s340 + $0x30] sm:$0xff]
        %v1052 = vld [vmem:[%s340 + $0x38] sm:$0xff]
        %v1053 = vld [vmem:[%s340 + $0x40] sm:$0xff]
        %v1054 = vld [vmem:[%s340 + $0x48] sm:$0xff]
        %v1055 = vld [vmem:[%s340 + $0x50] sm:$0xff]
        %v1056 = vld [vmem:[%s340 + $0x58] sm:$0xff]
        %v1057 = vld [vmem:[%s340 + $0x60] sm:$0xff]
        %v1058 = vld [vmem:[%s340 + $0x68] sm:$0xff]
        %v1059 = vld [vmem:[%s340 + $0x70] sm:$0xff]
        %v1060 = vld [vmem:[%s340 + $0x78] sm:$0xff]
        %v1061 = vld [vmem:[%s344] sm:$0x3]
        %v1063 = vlaneseq
        %v1064 = vshrl.u32 %v1063, 7
        %v1065 = vsub.s32 0, %v1064
        %v1066 = vrot.slane %v1061, %v1065
        %v1067 = vlaneseq
        %v1068 = vshrl.u32 %v1067, 7
        %v1069 = vsub.s32 1, %v1068
        %v1070 = vrot.slane %v1061, %v1069
        %v1105 = vunpack.c.l.b16 %v1013
        %v1106 = vunpack.c.l.b16 %v1014
        %v1107 = vunpack.c.l.b16 %v1015
        %v1108 = vunpack.c.l.b16 %v1016
        %v1109 = vunpack.c.l.b16 %v1017
        %v1110 = vunpack.c.l.b16 %v1018
        %v1111 = vunpack.c.l.b16 %v1019
        %v1112 = vunpack.c.l.b16 %v1020
        %v1113 = vunpack.c.l.b16 %v1021
        %v1114 = vunpack.c.l.b16 %v1022
        %v1115 = vunpack.c.l.b16 %v1023
        %v1116 = vunpack.c.l.b16 %v1024
        %v1117 = vunpack.c.l.b16 %v1025
        %v1118 = vunpack.c.l.b16 %v1026
        %v1119 = vunpack.c.l.b16 %v1027
        %v1120 = vunpack.c.l.b16 %v1028
        %v1121 = vunpack.c.l.b16 %v1029
        %v1122 = vunpack.c.l.b16 %v1030
        %v1123 = vunpack.c.l.b16 %v1031
        %v1124 = vunpack.c.l.b16 %v1032
        %v1125 = vunpack.c.l.b16 %v1033
        %v1126 = vunpack.c.l.b16 %v1034
        %v1127 = vunpack.c.l.b16 %v1035
        %v1128 = vunpack.c.l.b16 %v1036
        %v1129 = vunpack.c.l.b16 %v1037
        %v1130 = vunpack.c.l.b16 %v1038
        %v1131 = vunpack.c.l.b16 %v1039
        %v1132 = vunpack.c.l.b16 %v1040
        %v1133 = vunpack.c.l.b16 %v1041
        %v1134 = vunpack.c.l.b16 %v1042
        %v1135 = vunpack.c.l.b16 %v1043
        %v1136 = vunpack.c.l.b16 %v1044
        %v1137 = vpack.c.b16 %v1106, %v1105
        %v1138 = vpack.c.b16 %v1108, %v1107
        %v1139 = vpack.c.b16 %v1110, %v1109
        %v1140 = vpack.c.b16 %v1112, %v1111
        %v1141 = vpack.c.b16 %v1114, %v1113
        %v1142 = vpack.c.b16 %v1116, %v1115
        %v1143 = vpack.c.b16 %v1118, %v1117
        %v1144 = vpack.c.b16 %v1120, %v1119
        %v1145 = vpack.c.b16 %v1122, %v1121
        %v1146 = vpack.c.b16 %v1124, %v1123
        %v1147 = vpack.c.b16 %v1126, %v1125
        %v1148 = vpack.c.b16 %v1128, %v1127
        %v1149 = vpack.c.b16 %v1130, %v1129
        %v1150 = vpack.c.b16 %v1132, %v1131
        %v1151 = vpack.c.b16 %v1134, %v1133
        %v1152 = vpack.c.b16 %v1136, %v1135
        %v1185 = vunpack.c.l.b16 %v1045
        %v1186 = vunpack.c.h.b16 %v1045
        %v1187 = vunpack.c.l.b16 %v1046
        %v1188 = vunpack.c.h.b16 %v1046
        %v1189 = vunpack.c.l.b16 %v1047
        %v1190 = vunpack.c.h.b16 %v1047
        %v1191 = vunpack.c.l.b16 %v1048
        %v1192 = vunpack.c.h.b16 %v1048
        %v1193 = vunpack.c.l.b16 %v1049
        %v1194 = vunpack.c.h.b16 %v1049
        %v1195 = vunpack.c.l.b16 %v1050
        %v1196 = vunpack.c.h.b16 %v1050
        %v1197 = vunpack.c.l.b16 %v1051
        %v1198 = vunpack.c.h.b16 %v1051
        %v1199 = vunpack.c.l.b16 %v1052
        %v1200 = vunpack.c.h.b16 %v1052
        %v1201 = vunpack.c.l.b16 %v1053
        %v1202 = vunpack.c.h.b16 %v1053
        %v1203 = vunpack.c.l.b16 %v1054
        %v1204 = vunpack.c.h.b16 %v1054
        %v1205 = vunpack.c.l.b16 %v1055
        %v1206 = vunpack.c.h.b16 %v1055
        %v1207 = vunpack.c.l.b16 %v1056
        %v1208 = vunpack.c.h.b16 %v1056
        %v1209 = vunpack.c.l.b16 %v1057
        %v1210 = vunpack.c.h.b16 %v1057
        %v1211 = vunpack.c.l.b16 %v1058
        %v1212 = vunpack.c.h.b16 %v1058
        %v1213 = vunpack.c.l.b16 %v1059
        %v1214 = vunpack.c.h.b16 %v1059
        %v1215 = vunpack.c.l.b16 %v1060
        %v1216 = vunpack.c.h.b16 %v1060
        %v1217 = vpack.c.b16 %v1187, %v1185
        %v1218 = vpack.c.b16 %v1188, %v1186
        %v1219 = vpack.c.b16 %v1191, %v1189
        %v1220 = vpack.c.b16 %v1192, %v1190
        %v1221 = vpack.c.b16 %v1195, %v1193
        %v1222 = vpack.c.b16 %v1196, %v1194
        %v1223 = vpack.c.b16 %v1199, %v1197
        %v1224 = vpack.c.b16 %v1200, %v1198
        %v1225 = vpack.c.b16 %v1203, %v1201
        %v1226 = vpack.c.b16 %v1204, %v1202
        %v1227 = vpack.c.b16 %v1207, %v1205
        %v1228 = vpack.c.b16 %v1208, %v1206
        %v1229 = vpack.c.b16 %v1211, %v1209
        %v1230 = vpack.c.b16 %v1212, %v1210
        %v1231 = vpack.c.b16 %v1215, %v1213
        %v1232 = vpack.c.b16 %v1216, %v1214
        %1249 = vmatprep.subr.bf16.mxu0 %v1232
        %1250 = vmatpush1.bf16.msra.mxu0 %v1231
        %1251 = vmatprep.subr.bf16.mxu0 %v1230
        %1252 = vmatpush1.bf16.msra.mxu0 %v1229
        %1253 = vmatprep.subr.bf16.mxu0 %v1228
        %1254 = vmatpush1.bf16.msra.mxu0 %v1227
        %1255 = vmatprep.subr.bf16.mxu0 %v1226
        %1256 = vmatpush1.bf16.msra.mxu0 %v1225
        %1257 = vmatprep.subr.bf16.mxu0 %v1224
        %1258 = vmatpush1.bf16.msra.mxu0 %v1223
        %1259 = vmatprep.subr.bf16.mxu0 %v1222
        %1260 = vmatpush1.bf16.msra.mxu0 %v1221
        %1261 = vmatprep.subr.bf16.mxu0 %v1220
        %1262 = vmatpush1.bf16.msra.mxu0 %v1219
        %1263 = vmatprep.subr.bf16.mxu0 %v1218
        %1264 = vmatpush1.bf16.msra.mxu0 %v1217
        %1265 = vmatprep.subr.bf16.mxu0 0
        %1266 = vmatpush2.bf16.msra.mxu0 0
        %1267 = vmatprep.subr.bf16.mxu0 0
        %1268 = vmatpush2.bf16.msra.mxu0 0
        %1269 = vmatprep.subr.bf16.mxu0 0
        %1270 = vmatpush2.bf16.msra.mxu0 0
        %1271 = vmatprep.subr.bf16.mxu0 0
        %1272 = vmatpush2.bf16.msra.mxu0 0
        %1273 = vmatprep.subr.bf16.mxu0 0
        %1274 = vmatpush2.bf16.msra.mxu0 0
        %1275 = vmatprep.subr.bf16.mxu0 0
        %1276 = vmatpush2.bf16.msra.mxu0 0
        %1277 = vmatprep.subr.bf16.mxu0 0
        %1278 = vmatpush2.bf16.msra.mxu0 0
        %1279 = vmatprep.subr.bf16.mxu0 0
        %1280 = vmatpush2.bf16.msra.mxu0 0
        %1281 = vmatprep.mubr.bf16.mxu0 0
        %1282 = vmatmul.mubr.bf16.gmra.mxu0 %v1137
        %v1283 = vpop.f32.mrf.mxu0
        %v1284 = vadd.f32 %v1066, %v1283
        %v1285 = vpop.f32.mrf.mxu0
        %v1286 = vadd.f32 %v1070, %v1285
        %v1287 = vpop.f32.mrf.mxu0
        %v1288 = vadd.f32 %v1066, %v1287
        %v1289 = vpop.f32.mrf.mxu0
        %v1290 = vadd.f32 %v1070, %v1289
        %1291 = vmatprep.mubr.bf16.mxu0 0
        %1292 = vmatmul.mubr.bf16.gmra.mxu0 %v1138
        %v1293 = vpop.f32.mrf.mxu0
        %v1294 = vadd.f32 %v1066, %v1293
        %v1295 = vpop.f32.mrf.mxu0
        %v1296 = vadd.f32 %v1070, %v1295
        %v1297 = vpop.f32.mrf.mxu0
        %v1298 = vadd.f32 %v1066, %v1297
        %v1299 = vpop.f32.mrf.mxu0
        %v1300 = vadd.f32 %v1070, %v1299
        %1301 = vmatprep.mubr.bf16.mxu0 0
        %1302 = vmatmul.mubr.bf16.gmra.mxu0 %v1139
        %v1303 = vpop.f32.mrf.mxu0
        %v1304 = vadd.f32 %v1066, %v1303
        %v1305 = vpop.f32.mrf.mxu0
        %v1306 = vadd.f32 %v1070, %v1305
        %v1307 = vpop.f32.mrf.mxu0
        %v1308 = vadd.f32 %v1066, %v1307
        %v1309 = vpop.f32.mrf.mxu0
        %v1310 = vadd.f32 %v1070, %v1309
        %1311 = vmatprep.mubr.bf16.mxu0 0
        %1312 = vmatmul.mubr.bf16.gmra.mxu0 %v1140
        %v1313 = vpop.f32.mrf.mxu0
        %v1314 = vadd.f32 %v1066, %v1313
        %v1315 = vpop.f32.mrf.mxu0
        %v1316 = vadd.f32 %v1070, %v1315
        %v1317 = vpop.f32.mrf.mxu0
        %v1318 = vadd.f32 %v1066, %v1317
        %v1319 = vpop.f32.mrf.mxu0
        %v1320 = vadd.f32 %v1070, %v1319
        %1321 = vmatprep.mubr.bf16.mxu0 0
        %1322 = vmatmul.mubr.bf16.gmra.mxu0 %v1141
        %v1323 = vpop.f32.mrf.mxu0
        %v1324 = vadd.f32 %v1066, %v1323
        %v1325 = vpop.f32.mrf.mxu0
        %v1326 = vadd.f32 %v1070, %v1325
        %v1327 = vpop.f32.mrf.mxu0
        %v1328 = vadd.f32 %v1066, %v1327
        %v1329 = vpop.f32.mrf.mxu0
        %v1330 = vadd.f32 %v1070, %v1329
        %1331 = vmatprep.mubr.bf16.mxu0 0
        %1332 = vmatmul.mubr.bf16.gmra.mxu0 %v1142
        %v1333 = vpop.f32.mrf.mxu0
        %v1334 = vadd.f32 %v1066, %v1333
        %v1335 = vpop.f32.mrf.mxu0
        %v1336 = vadd.f32 %v1070, %v1335
        %v1337 = vpop.f32.mrf.mxu0
        %v1338 = vadd.f32 %v1066, %v1337
        %v1339 = vpop.f32.mrf.mxu0
        %v1340 = vadd.f32 %v1070, %v1339
        %1341 = vmatprep.mubr.bf16.mxu0 0
        %1342 = vmatmul.mubr.bf16.gmra.mxu0 %v1143
        %v1343 = vpop.f32.mrf.mxu0
        %v1344 = vadd.f32 %v1066, %v1343
        %v1345 = vpop.f32.mrf.mxu0
        %v1346 = vadd.f32 %v1070, %v1345
        %v1347 = vpop.f32.mrf.mxu0
        %v1348 = vadd.f32 %v1066, %v1347
        %v1349 = vpop.f32.mrf.mxu0
        %v1350 = vadd.f32 %v1070, %v1349
        %1351 = vmatprep.mubr.bf16.mxu0 0
        %1352 = vmatmul.mubr.bf16.gmra.mxu0 %v1144
        %v1353 = vpop.f32.mrf.mxu0
        %v1354 = vadd.f32 %v1066, %v1353
        %v1355 = vpop.f32.mrf.mxu0
        %v1356 = vadd.f32 %v1070, %v1355
        %v1357 = vpop.f32.mrf.mxu0
        %v1358 = vadd.f32 %v1066, %v1357
        %v1359 = vpop.f32.mrf.mxu0
        %v1360 = vadd.f32 %v1070, %v1359
        %1361 = vmatprep.mubr.bf16.mxu0 0
        %1362 = vmatmul.mubr.bf16.gmra.mxu0 %v1145
        %v1363 = vpop.f32.mrf.mxu0
        %v1364 = vadd.f32 %v1066, %v1363
        %v1365 = vpop.f32.mrf.mxu0
        %v1366 = vadd.f32 %v1070, %v1365
        %v1367 = vpop.f32.mrf.mxu0
        %v1368 = vadd.f32 %v1066, %v1367
        %v1369 = vpop.f32.mrf.mxu0
        %v1370 = vadd.f32 %v1070, %v1369
        %1371 = vmatprep.mubr.bf16.mxu0 0
        %1372 = vmatmul.mubr.bf16.gmra.mxu0 %v1146
        %v1373 = vpop.f32.mrf.mxu0
        %v1374 = vadd.f32 %v1066, %v1373
        %v1375 = vpop.f32.mrf.mxu0
        %v1376 = vadd.f32 %v1070, %v1375
        %v1377 = vpop.f32.mrf.mxu0
        %v1378 = vadd.f32 %v1066, %v1377
        %v1379 = vpop.f32.mrf.mxu0
        %v1380 = vadd.f32 %v1070, %v1379
        %1381 = vmatprep.mubr.bf16.mxu0 0
        %1382 = vmatmul.mubr.bf16.gmra.mxu0 %v1147
        %v1383 = vpop.f32.mrf.mxu0
        %v1384 = vadd.f32 %v1066, %v1383
        %v1385 = vpop.f32.mrf.mxu0
        %v1386 = vadd.f32 %v1070, %v1385
        %v1387 = vpop.f32.mrf.mxu0
        %v1388 = vadd.f32 %v1066, %v1387
        %v1389 = vpop.f32.mrf.mxu0
        %v1390 = vadd.f32 %v1070, %v1389
        %1391 = vmatprep.mubr.bf16.mxu0 0
        %1392 = vmatmul.mubr.bf16.gmra.mxu0 %v1148
        %v1393 = vpop.f32.mrf.mxu0
        %v1394 = vadd.f32 %v1066, %v1393
        %v1395 = vpop.f32.mrf.mxu0
        %v1396 = vadd.f32 %v1070, %v1395
        %v1397 = vpop.f32.mrf.mxu0
        %v1398 = vadd.f32 %v1066, %v1397
        %v1399 = vpop.f32.mrf.mxu0
        %v1400 = vadd.f32 %v1070, %v1399
        %1401 = vmatprep.mubr.bf16.mxu0 0
        %1402 = vmatmul.mubr.bf16.gmra.mxu0 %v1149
        %v1403 = vpop.f32.mrf.mxu0
        %v1404 = vadd.f32 %v1066, %v1403
        %v1405 = vpop.f32.mrf.mxu0
        %v1406 = vadd.f32 %v1070, %v1405
        %v1407 = vpop.f32.mrf.mxu0
        %v1408 = vadd.f32 %v1066, %v1407
        %v1409 = vpop.f32.mrf.mxu0
        %v1410 = vadd.f32 %v1070, %v1409
        %1411 = vmatprep.mubr.bf16.mxu0 0
        %1412 = vmatmul.mubr.bf16.gmra.mxu0 %v1150
        %v1413 = vpop.f32.mrf.mxu0
        %v1414 = vadd.f32 %v1066, %v1413
        %v1415 = vpop.f32.mrf.mxu0
        %v1416 = vadd.f32 %v1070, %v1415
        %v1417 = vpop.f32.mrf.mxu0
        %v1418 = vadd.f32 %v1066, %v1417
        %v1419 = vpop.f32.mrf.mxu0
        %v1420 = vadd.f32 %v1070, %v1419
        %1421 = vmatprep.mubr.bf16.mxu0 0
        %1422 = vmatmul.mubr.bf16.gmra.mxu0 %v1151
        %v1423 = vpop.f32.mrf.mxu0
        %v1424 = vadd.f32 %v1066, %v1423
        %v1425 = vpop.f32.mrf.mxu0
        %v1426 = vadd.f32 %v1070, %v1425
        %v1427 = vpop.f32.mrf.mxu0
        %v1428 = vadd.f32 %v1066, %v1427
        %v1429 = vpop.f32.mrf.mxu0
        %v1430 = vadd.f32 %v1070, %v1429
        %1431 = vmatprep.mubr.bf16.mxu0 0
        %1432 = vmatmul.mubr.bf16.gmra.mxu0 %v1152
        %v1433 = vpop.f32.mrf.mxu0
        %v1434 = vadd.f32 %v1066, %v1433
        %v1435 = vpop.f32.mrf.mxu0
        %v1436 = vadd.f32 %v1070, %v1435
        %v1437 = vpop.f32.mrf.mxu0
        %v1438 = vadd.f32 %v1066, %v1437
        %v1439 = vpop.f32.mrf.mxu0
        %v1440 = vadd.f32 %v1070, %v1439
        %1441 = vdwg.mxu0
        %v1442 = vmax.f32 %v1284, 0.0
        %v1443 = vmax.f32 %v1286, 0.0
        %v1444 = vmax.f32 %v1288, 0.0
        %v1445 = vmax.f32 %v1290, 0.0
        %v1446 = vmax.f32 %v1294, 0.0
        %v1447 = vmax.f32 %v1296, 0.0
        %v1448 = vmax.f32 %v1298, 0.0
        %v1449 = vmax.f32 %v1300, 0.0
        %v1450 = vmax.f32 %v1304, 0.0
        %v1451 = vmax.f32 %v1306, 0.0
        %v1452 = vmax.f32 %v1308, 0.0
        %v1453 = vmax.f32 %v1310, 0.0
        %v1454 = vmax.f32 %v1314, 0.0
        %v1455 = vmax.f32 %v1316, 0.0
        %v1456 = vmax.f32 %v1318, 0.0
        %v1457 = vmax.f32 %v1320, 0.0
        %v1458 = vmax.f32 %v1324, 0.0
        %v1459 = vmax.f32 %v1326, 0.0
        %v1460 = vmax.f32 %v1328, 0.0
        %v1461 = vmax.f32 %v1330, 0.0
        %v1462 = vmax.f32 %v1334, 0.0
        %v1463 = vmax.f32 %v1336, 0.0
        %v1464 = vmax.f32 %v1338, 0.0
        %v1465 = vmax.f32 %v1340, 0.0
        %v1466 = vmax.f32 %v1344, 0.0
        %v1467 = vmax.f32 %v1346, 0.0
        %v1468 = vmax.f32 %v1348, 0.0
        %v1469 = vmax.f32 %v1350, 0.0
        %v1470 = vmax.f32 %v1354, 0.0
        %v1471 = vmax.f32 %v1356, 0.0
        %v1472 = vmax.f32 %v1358, 0.0
        %v1473 = vmax.f32 %v1360, 0.0
        %v1474 = vmax.f32 %v1364, 0.0
        %v1475 = vmax.f32 %v1366, 0.0
        %v1476 = vmax.f32 %v1368, 0.0
        %v1477 = vmax.f32 %v1370, 0.0
        %v1478 = vmax.f32 %v1374, 0.0
        %v1479 = vmax.f32 %v1376, 0.0
        %v1480 = vmax.f32 %v1378, 0.0
        %v1481 = vmax.f32 %v1380, 0.0
        %v1482 = vmax.f32 %v1384, 0.0
        %v1483 = vmax.f32 %v1386, 0.0
        %v1484 = vmax.f32 %v1388, 0.0
        %v1485 = vmax.f32 %v1390, 0.0
        %v1486 = vmax.f32 %v1394, 0.0
        %v1487 = vmax.f32 %v1396, 0.0
        %v1488 = vmax.f32 %v1398, 0.0
        %v1489 = vmax.f32 %v1400, 0.0
        %v1490 = vmax.f32 %v1404, 0.0
        %v1491 = vmax.f32 %v1406, 0.0
        %v1492 = vmax.f32 %v1408, 0.0
        %v1493 = vmax.f32 %v1410, 0.0
        %v1494 = vmax.f32 %v1414, 0.0
        %v1495 = vmax.f32 %v1416, 0.0
        %v1496 = vmax.f32 %v1418, 0.0
        %v1497 = vmax.f32 %v1420, 0.0
        %v1498 = vmax.f32 %v1424, 0.0
        %v1499 = vmax.f32 %v1426, 0.0
        %v1500 = vmax.f32 %v1428, 0.0
        %v1501 = vmax.f32 %v1430, 0.0
        %v1502 = vmax.f32 %v1434, 0.0
        %v1503 = vmax.f32 %v1436, 0.0
        %v1504 = vmax.f32 %v1438, 0.0
        %v1505 = vmax.f32 %v1440, 0.0
        %v1506 = vld [vmem:[%s329] sm:$0xff]
        %v1507 = vld [vmem:[%s329 + $0x8] sm:$0xff]
        %v1508 = vld [vmem:[%s329 + $0x10] sm:$0xff]
        %v1509 = vld [vmem:[%s329 + $0x18] sm:$0xff]
        %v1510 = vld [vmem:[%s329 + $0x20] sm:$0xff]
        %v1511 = vld [vmem:[%s329 + $0x28] sm:$0xff]
        %v1512 = vld [vmem:[%s329 + $0x30] sm:$0xff]
        %v1513 = vld [vmem:[%s329 + $0x38] sm:$0xff]
        %v1514 = vld [vmem:[%s329 + $0x40] sm:$0xff]
        %v1515 = vld [vmem:[%s329 + $0x48] sm:$0xff]
        %v1516 = vld [vmem:[%s329 + $0x50] sm:$0xff]
        %v1517 = vld [vmem:[%s329 + $0x58] sm:$0xff]
        %v1518 = vld [vmem:[%s329 + $0x60] sm:$0xff]
        %v1519 = vld [vmem:[%s329 + $0x68] sm:$0xff]
        %v1520 = vld [vmem:[%s329 + $0x70] sm:$0xff]
        %v1521 = vld [vmem:[%s329 + $0x78] sm:$0xff]
        %v1522 = vld [vmem:[%s329 + $0x80] sm:$0xff]
        %v1523 = vld [vmem:[%s329 + $0x88] sm:$0xff]
        %v1524 = vld [vmem:[%s329 + $0x90] sm:$0xff]
        %v1525 = vld [vmem:[%s329 + $0x98] sm:$0xff]
        %v1526 = vld [vmem:[%s329 + $0xa0] sm:$0xff]
        %v1527 = vld [vmem:[%s329 + $0xa8] sm:$0xff]
        %v1528 = vld [vmem:[%s329 + $0xb0] sm:$0xff]
        %v1529 = vld [vmem:[%s329 + $0xb8] sm:$0xff]
        %v1530 = vld [vmem:[%s329 + $0xc0] sm:$0xff]
        %v1531 = vld [vmem:[%s329 + $0xc8] sm:$0xff]
        %v1532 = vld [vmem:[%s329 + $0xd0] sm:$0xff]
        %v1533 = vld [vmem:[%s329 + $0xd8] sm:$0xff]
        %v1534 = vld [vmem:[%s329 + $0xe0] sm:$0xff]
        %v1535 = vld [vmem:[%s329 + $0xe8] sm:$0xff]
        %v1536 = vld [vmem:[%s329 + $0xf0] sm:$0xff]
        %v1537 = vld [vmem:[%s329 + $0xf8] sm:$0xff]
        %v1538 = vpack.c.bf16 %v1444, %v1442
        %v1539 = vpack.c.bf16 %v1445, %v1443
        %v1540 = vpack.c.bf16 %v1448, %v1446
        %v1541 = vpack.c.bf16 %v1449, %v1447
        %v1542 = vpack.c.bf16 %v1452, %v1450
        %v1543 = vpack.c.bf16 %v1453, %v1451
        %v1544 = vpack.c.bf16 %v1456, %v1454
        %v1545 = vpack.c.bf16 %v1457, %v1455
        %v1546 = vpack.c.bf16 %v1460, %v1458
        %v1547 = vpack.c.bf16 %v1461, %v1459
        %v1548 = vpack.c.bf16 %v1464, %v1462
        %v1549 = vpack.c.bf16 %v1465, %v1463
        %v1550 = vpack.c.bf16 %v1468, %v1466
        %v1551 = vpack.c.bf16 %v1469, %v1467
        %v1552 = vpack.c.bf16 %v1472, %v1470
        %v1553 = vpack.c.bf16 %v1473, %v1471
        %v1554 = vpack.c.bf16 %v1476, %v1474
        %v1555 = vpack.c.bf16 %v1477, %v1475
        %v1556 = vpack.c.bf16 %v1480, %v1478
        %v1557 = vpack.c.bf16 %v1481, %v1479
        %v1558 = vpack.c.bf16 %v1484, %v1482
        %v1559 = vpack.c.bf16 %v1485, %v1483
        %v1560 = vpack.c.bf16 %v1488, %v1486
        %v1561 = vpack.c.bf16 %v1489, %v1487
        %v1562 = vpack.c.bf16 %v1492, %v1490
        %v1563 = vpack.c.bf16 %v1493, %v1491
        %v1564 = vpack.c.bf16 %v1496, %v1494
        %v1565 = vpack.c.bf16 %v1497, %v1495
        %v1566 = vpack.c.bf16 %v1500, %v1498
        %v1567 = vpack.c.bf16 %v1501, %v1499
        %v1568 = vpack.c.bf16 %v1504, %v1502
        %v1569 = vpack.c.bf16 %v1505, %v1503
        %v1570 = vld [vmem:[%s350] sm:$0xf]
        %v1571 = vld [vmem:[%s350 + $0x4] sm:$0xf]
        %v1572 = vld [vmem:[%s350 + $0x8] sm:$0xf]
        %v1573 = vld [vmem:[%s350 + $0xc] sm:$0xf]
        %v1574 = vld [vmem:[%s350 + $0x10] sm:$0xf]
        %v1575 = vld [vmem:[%s350 + $0x14] sm:$0xf]
        %v1576 = vld [vmem:[%s350 + $0x18] sm:$0xf]
        %v1577 = vld [vmem:[%s350 + $0x1c] sm:$0xf]
        %v1578 = vld [vmem:[%s350 + $0x20] sm:$0xf]
        %v1579 = vld [vmem:[%s350 + $0x24] sm:$0xf]
        %v1580 = vld [vmem:[%s350 + $0x28] sm:$0xf]
        %v1581 = vld [vmem:[%s350 + $0x2c] sm:$0xf]
        %v1582 = vld [vmem:[%s350 + $0x30] sm:$0xf]
        %v1583 = vld [vmem:[%s350 + $0x34] sm:$0xf]
        %v1584 = vld [vmem:[%s350 + $0x38] sm:$0xf]
        %v1585 = vld [vmem:[%s350 + $0x3c] sm:$0xf]
        %v1586 = vld [vmem:[%s350 + $0x40] sm:$0xf]
        %v1587 = vld [vmem:[%s350 + $0x44] sm:$0xf]
        %v1588 = vld [vmem:[%s350 + $0x48] sm:$0xf]
        %v1589 = vld [vmem:[%s350 + $0x4c] sm:$0xf]
        %v1590 = vld [vmem:[%s350 + $0x50] sm:$0xf]
        %v1591 = vld [vmem:[%s350 + $0x54] sm:$0xf]
        %v1592 = vld [vmem:[%s350 + $0x58] sm:$0xf]
        %v1593 = vld [vmem:[%s350 + $0x5c] sm:$0xf]
        %v1594 = vld [vmem:[%s350 + $0x60] sm:$0xf]
        %v1595 = vld [vmem:[%s350 + $0x64] sm:$0xf]
        %v1596 = vld [vmem:[%s350 + $0x68] sm:$0xf]
        %v1597 = vld [vmem:[%s350 + $0x6c] sm:$0xf]
        %v1598 = vld [vmem:[%s350 + $0x70] sm:$0xf]
        %v1599 = vld [vmem:[%s350 + $0x74] sm:$0xf]
        %v1600 = vld [vmem:[%s350 + $0x78] sm:$0xf]
        %v1601 = vld [vmem:[%s350 + $0x7c] sm:$0xf]
        %v1634 = vunpack.c.l.b16 %v1570
        %v1635 = vunpack.c.l.b16 %v1571
        %v1636 = vunpack.c.l.b16 %v1572
        %v1637 = vunpack.c.l.b16 %v1573
        %v1638 = vunpack.c.l.b16 %v1574
        %v1639 = vunpack.c.l.b16 %v1575
        %v1640 = vunpack.c.l.b16 %v1576
        %v1641 = vunpack.c.l.b16 %v1577
        %v1642 = vunpack.c.l.b16 %v1578
        %v1643 = vunpack.c.l.b16 %v1579
        %v1644 = vunpack.c.l.b16 %v1580
        %v1645 = vunpack.c.l.b16 %v1581
        %v1646 = vunpack.c.l.b16 %v1582
        %v1647 = vunpack.c.l.b16 %v1583
        %v1648 = vunpack.c.l.b16 %v1584
        %v1649 = vunpack.c.l.b16 %v1585
        %v1650 = vunpack.c.l.b16 %v1586
        %v1651 = vunpack.c.l.b16 %v1587
        %v1652 = vunpack.c.l.b16 %v1588
        %v1653 = vunpack.c.l.b16 %v1589
        %v1654 = vunpack.c.l.b16 %v1590
        %v1655 = vunpack.c.l.b16 %v1591
        %v1656 = vunpack.c.l.b16 %v1592
        %v1657 = vunpack.c.l.b16 %v1593
        %v1658 = vunpack.c.l.b16 %v1594
        %v1659 = vunpack.c.l.b16 %v1595
        %v1660 = vunpack.c.l.b16 %v1596
        %v1661 = vunpack.c.l.b16 %v1597
        %v1662 = vunpack.c.l.b16 %v1598
        %v1663 = vunpack.c.l.b16 %v1599
        %v1664 = vunpack.c.l.b16 %v1600
        %v1665 = vunpack.c.l.b16 %v1601
        %v1666 = vpack.c.b16 %v1635, %v1634
        %v1667 = vpack.c.b16 %v1637, %v1636
        %v1668 = vpack.c.b16 %v1639, %v1638
        %v1669 = vpack.c.b16 %v1641, %v1640
        %v1670 = vpack.c.b16 %v1643, %v1642
        %v1671 = vpack.c.b16 %v1645, %v1644
        %v1672 = vpack.c.b16 %v1647, %v1646
        %v1673 = vpack.c.b16 %v1649, %v1648
        %v1674 = vpack.c.b16 %v1651, %v1650
        %v1675 = vpack.c.b16 %v1653, %v1652
        %v1676 = vpack.c.b16 %v1655, %v1654
        %v1677 = vpack.c.b16 %v1657, %v1656
        %v1678 = vpack.c.b16 %v1659, %v1658
        %v1679 = vpack.c.b16 %v1661, %v1660
        %v1680 = vpack.c.b16 %v1663, %v1662
        %v1681 = vpack.c.b16 %v1665, %v1664
        %1698 = vmatprep.subr.bf16.mxu0 0
        %1699 = vmatpush1.bf16.msra.mxu0 %v1673
        %1700 = vmatprep.subr.bf16.mxu0 0
        %1701 = vmatpush1.bf16.msra.mxu0 %v1672
        %1702 = vmatprep.subr.bf16.mxu0 0
        %1703 = vmatpush1.bf16.msra.mxu0 %v1671
        %1704 = vmatprep.subr.bf16.mxu0 0
        %1705 = vmatpush1.bf16.msra.mxu0 %v1670
        %1706 = vmatprep.subr.bf16.mxu0 0
        %1707 = vmatpush1.bf16.msra.mxu0 %v1669
        %1708 = vmatprep.subr.bf16.mxu0 0
        %1709 = vmatpush1.bf16.msra.mxu0 %v1668
        %1710 = vmatprep.subr.bf16.mxu0 0
        %1711 = vmatpush1.bf16.msra.mxu0 %v1667
        %1712 = vmatprep.subr.bf16.mxu0 0
        %1713 = vmatpush1.bf16.msra.mxu0 %v1666
        %1714 = vmatprep.subr.bf16.mxu0 0
        %1715 = vmatpush2.bf16.msra.mxu0 %v1681
        %1716 = vmatprep.subr.bf16.mxu0 0
        %1717 = vmatpush2.bf16.msra.mxu0 %v1680
        %1718 = vmatprep.subr.bf16.mxu0 0
        %1719 = vmatpush2.bf16.msra.mxu0 %v1679
        %1720 = vmatprep.subr.bf16.mxu0 0
        %1721 = vmatpush2.bf16.msra.mxu0 %v1678
        %1722 = vmatprep.subr.bf16.mxu0 0
        %1723 = vmatpush2.bf16.msra.mxu0 %v1677
        %1724 = vmatprep.subr.bf16.mxu0 0
        %1725 = vmatpush2.bf16.msra.mxu0 %v1676
        %1726 = vmatprep.subr.bf16.mxu0 0
        %1727 = vmatpush2.bf16.msra.mxu0 %v1675
        %1728 = vmatprep.subr.bf16.mxu0 0
        %1729 = vmatpush2.bf16.msra.mxu0 %v1674
        %1730 = vmatprep.mubr.bf16.mxu0 %v1539
        %1731 = vmatmul.mubr.bf16.gmra.mxu0 %v1538
        %v1732 = vpop.f32.mrf.mxu0
        %v1733 = vadd.f32 0.0, %v1732
        %v1734 = vpop.f32.mrf.mxu0
        %v1735 = vpop.f32.mrf.mxu0
        %v1736 = vadd.f32 0.0, %v1735
        %v1737 = vpop.f32.mrf.mxu0
        %1738 = vmatprep.mubr.bf16.mxu0 %v1541
        %1739 = vmatmul.mubr.bf16.gmra.mxu0 %v1540
        %v1740 = vpop.f32.mrf.mxu0
        %v1741 = vadd.f32 0.0, %v1740
        %v1742 = vpop.f32.mrf.mxu0
        %v1743 = vpop.f32.mrf.mxu0
        %v1744 = vadd.f32 0.0, %v1743
        %v1745 = vpop.f32.mrf.mxu0
        %1746 = vmatprep.mubr.bf16.mxu0 %v1543
        %1747 = vmatmul.mubr.bf16.gmra.mxu0 %v1542
        %v1748 = vpop.f32.mrf.mxu0
        %v1749 = vadd.f32 0.0, %v1748
        %v1750 = vpop.f32.mrf.mxu0
        %v1751 = vpop.f32.mrf.mxu0
        %v1752 = vadd.f32 0.0, %v1751
        %v1753 = vpop.f32.mrf.mxu0
        %1754 = vmatprep.mubr.bf16.mxu0 %v1545
        %1755 = vmatmul.mubr.bf16.gmra.mxu0 %v1544
        %v1756 = vpop.f32.mrf.mxu0
        %v1757 = vadd.f32 0.0, %v1756
        %v1758 = vpop.f32.mrf.mxu0
        %v1759 = vpop.f32.mrf.mxu0
        %v1760 = vadd.f32 0.0, %v1759
        %v1761 = vpop.f32.mrf.mxu0
        %1762 = vmatprep.mubr.bf16.mxu0 %v1547
        %1763 = vmatmul.mubr.bf16.gmra.mxu0 %v1546
        %v1764 = vpop.f32.mrf.mxu0
        %v1765 = vadd.f32 0.0, %v1764
        %v1766 = vpop.f32.mrf.mxu0
        %v1767 = vpop.f32.mrf.mxu0
        %v1768 = vadd.f32 0.0, %v1767
        %v1769 = vpop.f32.mrf.mxu0
        %1770 = vmatprep.mubr.bf16.mxu0 %v1549
        %1771 = vmatmul.mubr.bf16.gmra.mxu0 %v1548
        %v1772 = vpop.f32.mrf.mxu0
        %v1773 = vadd.f32 0.0, %v1772
        %v1774 = vpop.f32.mrf.mxu0
        %v1775 = vpop.f32.mrf.mxu0
        %v1776 = vadd.f32 0.0, %v1775
        %v1777 = vpop.f32.mrf.mxu0
        %1778 = vmatprep.mubr.bf16.mxu0 %v1551
        %1779 = vmatmul.mubr.bf16.gmra.mxu0 %v1550
        %v1780 = vpop.f32.mrf.mxu0
        %v1781 = vadd.f32 0.0, %v1780
        %v1782 = vpop.f32.mrf.mxu0
        %v1783 = vpop.f32.mrf.mxu0
        %v1784 = vadd.f32 0.0, %v1783
        %v1785 = vpop.f32.mrf.mxu0
        %1786 = vmatprep.mubr.bf16.mxu0 %v1553
        %1787 = vmatmul.mubr.bf16.gmra.mxu0 %v1552
        %v1788 = vpop.f32.mrf.mxu0
        %v1789 = vadd.f32 0.0, %v1788
        %v1790 = vpop.f32.mrf.mxu0
        %v1791 = vpop.f32.mrf.mxu0
        %v1792 = vadd.f32 0.0, %v1791
        %v1793 = vpop.f32.mrf.mxu0
        %1794 = vmatprep.mubr.bf16.mxu0 %v1555
        %1795 = vmatmul.mubr.bf16.gmra.mxu0 %v1554
        %v1796 = vpop.f32.mrf.mxu0
        %v1797 = vadd.f32 0.0, %v1796
        %v1798 = vpop.f32.mrf.mxu0
        %v1799 = vpop.f32.mrf.mxu0
        %v1800 = vadd.f32 0.0, %v1799
        %v1801 = vpop.f32.mrf.mxu0
        %1802 = vmatprep.mubr.bf16.mxu0 %v1557
        %1803 = vmatmul.mubr.bf16.gmra.mxu0 %v1556
        %v1804 = vpop.f32.mrf.mxu0
        %v1805 = vadd.f32 0.0, %v1804
        %v1806 = vpop.f32.mrf.mxu0
        %v1807 = vpop.f32.mrf.mxu0
        %v1808 = vadd.f32 0.0, %v1807
        %v1809 = vpop.f32.mrf.mxu0
        %1810 = vmatprep.mubr.bf16.mxu0 %v1559
        %1811 = vmatmul.mubr.bf16.gmra.mxu0 %v1558
        %v1812 = vpop.f32.mrf.mxu0
        %v1813 = vadd.f32 0.0, %v1812
        %v1814 = vpop.f32.mrf.mxu0
        %v1815 = vpop.f32.mrf.mxu0
        %v1816 = vadd.f32 0.0, %v1815
        %v1817 = vpop.f32.mrf.mxu0
        %1818 = vmatprep.mubr.bf16.mxu0 %v1561
        %1819 = vmatmul.mubr.bf16.gmra.mxu0 %v1560
        %v1820 = vpop.f32.mrf.mxu0
        %v1821 = vadd.f32 0.0, %v1820
        %v1822 = vpop.f32.mrf.mxu0
        %v1823 = vpop.f32.mrf.mxu0
        %v1824 = vadd.f32 0.0, %v1823
        %v1825 = vpop.f32.mrf.mxu0
        %1826 = vmatprep.mubr.bf16.mxu0 %v1563
        %1827 = vmatmul.mubr.bf16.gmra.mxu0 %v1562
        %v1828 = vpop.f32.mrf.mxu0
        %v1829 = vadd.f32 0.0, %v1828
        %v1830 = vpop.f32.mrf.mxu0
        %v1831 = vpop.f32.mrf.mxu0
        %v1832 = vadd.f32 0.0, %v1831
        %v1833 = vpop.f32.mrf.mxu0
        %1834 = vmatprep.mubr.bf16.mxu0 %v1565
        %1835 = vmatmul.mubr.bf16.gmra.mxu0 %v1564
        %v1836 = vpop.f32.mrf.mxu0
        %v1837 = vadd.f32 0.0, %v1836
        %v1838 = vpop.f32.mrf.mxu0
        %v1839 = vpop.f32.mrf.mxu0
        %v1840 = vadd.f32 0.0, %v1839
        %v1841 = vpop.f32.mrf.mxu0
        %1842 = vmatprep.mubr.bf16.mxu0 %v1567
        %1843 = vmatmul.mubr.bf16.gmra.mxu0 %v1566
        %v1844 = vpop.f32.mrf.mxu0
        %v1845 = vadd.f32 0.0, %v1844
        %v1846 = vpop.f32.mrf.mxu0
        %v1847 = vpop.f32.mrf.mxu0
        %v1848 = vadd.f32 0.0, %v1847
        %v1849 = vpop.f32.mrf.mxu0
        %1850 = vmatprep.mubr.bf16.mxu0 %v1569
        %1851 = vmatmul.mubr.bf16.gmra.mxu0 %v1568
        %v1852 = vpop.f32.mrf.mxu0
        %v1853 = vadd.f32 0.0, %v1852
        %v1854 = vpop.f32.mrf.mxu0
        %v1855 = vpop.f32.mrf.mxu0
        %v1856 = vadd.f32 0.0, %v1855
        %v1857 = vpop.f32.mrf.mxu0
        %1858 = vdwg.mxu0
        %v1859 = vadd.f32 %v1506, %v1733
        %v1860 = vadd.f32 %v1507, %v1736
        %v1861 = vadd.f32 %v1508, %v1741
        %v1862 = vadd.f32 %v1509, %v1744
        %v1863 = vadd.f32 %v1510, %v1749
        %v1864 = vadd.f32 %v1511, %v1752
        %v1865 = vadd.f32 %v1512, %v1757
        %v1866 = vadd.f32 %v1513, %v1760
        %v1867 = vadd.f32 %v1514, %v1765
        %v1868 = vadd.f32 %v1515, %v1768
        %v1869 = vadd.f32 %v1516, %v1773
        %v1870 = vadd.f32 %v1517, %v1776
        %v1871 = vadd.f32 %v1518, %v1781
        %v1872 = vadd.f32 %v1519, %v1784
        %v1873 = vadd.f32 %v1520, %v1789
        %v1874 = vadd.f32 %v1521, %v1792
        %v1875 = vadd.f32 %v1522, %v1797
        %v1876 = vadd.f32 %v1523, %v1800
        %v1877 = vadd.f32 %v1524, %v1805
        %v1878 = vadd.f32 %v1525, %v1808
        %v1879 = vadd.f32 %v1526, %v1813
        %v1880 = vadd.f32 %v1527, %v1816
        %v1881 = vadd.f32 %v1528, %v1821
        %v1882 = vadd.f32 %v1529, %v1824
        %v1883 = vadd.f32 %v1530, %v1829
        %v1884 = vadd.f32 %v1531, %v1832
        %v1885 = vadd.f32 %v1532, %v1837
        %v1886 = vadd.f32 %v1533, %v1840
        %v1887 = vadd.f32 %v1534, %v1845
        %v1888 = vadd.f32 %v1535, %v1848
        %v1889 = vadd.f32 %v1536, %v1853
        %v1890 = vadd.f32 %v1537, %v1856
        %1891 = vst [vmem:[%s329] sm:$0xff] %v1859
        %1892 = vst [vmem:[%s329 + $0x8] sm:$0xff] %v1860
        %1893 = vst [vmem:[%s329 + $0x10] sm:$0xff] %v1861
        %1894 = vst [vmem:[%s329 + $0x18] sm:$0xff] %v1862
        %1895 = vst [vmem:[%s329 + $0x20] sm:$0xff] %v1863
        %1896 = vst [vmem:[%s329 + $0x28] sm:$0xff] %v1864
        %1897 = vst [vmem:[%s329 + $0x30] sm:$0xff] %v1865
        %1898 = vst [vmem:[%s329 + $0x38] sm:$0xff] %v1866
        %1899 = vst [vmem:[%s329 + $0x40] sm:$0xff] %v1867
        %1900 = vst [vmem:[%s329 + $0x48] sm:$0xff] %v1868
        %1901 = vst [vmem:[%s329 + $0x50] sm:$0xff] %v1869
        %1902 = vst [vmem:[%s329 + $0x58] sm:$0xff] %v1870
        %1903 = vst [vmem:[%s329 + $0x60] sm:$0xff] %v1871
        %1904 = vst [vmem:[%s329 + $0x68] sm:$0xff] %v1872
        %1905 = vst [vmem:[%s329 + $0x70] sm:$0xff] %v1873
        %1906 = vst [vmem:[%s329 + $0x78] sm:$0xff] %v1874
        %1907 = vst [vmem:[%s329 + $0x80] sm:$0xff] %v1875
        %1908 = vst [vmem:[%s329 + $0x88] sm:$0xff] %v1876
        %1909 = vst [vmem:[%s329 + $0x90] sm:$0xff] %v1877
        %1910 = vst [vmem:[%s329 + $0x98] sm:$0xff] %v1878
        %1911 = vst [vmem:[%s329 + $0xa0] sm:$0xff] %v1879
        %1912 = vst [vmem:[%s329 + $0xa8] sm:$0xff] %v1880
        %1913 = vst [vmem:[%s329 + $0xb0] sm:$0xff] %v1881
        %1914 = vst [vmem:[%s329 + $0xb8] sm:$0xff] %v1882
        %1915 = vst [vmem:[%s329 + $0xc0] sm:$0xff] %v1883
        %1916 = vst [vmem:[%s329 + $0xc8] sm:$0xff] %v1884
        %1917 = vst [vmem:[%s329 + $0xd0] sm:$0xff] %v1885
        %1918 = vst [vmem:[%s329 + $0xd8] sm:$0xff] %v1886
        %1919 = vst [vmem:[%s329 + $0xe0] sm:$0xff] %v1887
        %1920 = vst [vmem:[%s329 + $0xe8] sm:$0xff] %v1888
        %1921 = vst [vmem:[%s329 + $0xf0] sm:$0xff] %v1889
        %1922 = vst [vmem:[%s329 + $0xf8] sm:$0xff] %v1890
        // Predicated region
        $region53: #{positionwise_ffn.1} parent=47 // pred_check
          %p1923 = pneg %p354
        $region54: #{positionwise_ffn.1} parent=47 // pred_check_branch
          %1925 = sbr.rel (%p1923) target = $region56
        $region55: #{positionwise_ffn.1} parent=47 // pred_region
          %v1926 = vld [vmem:[%s329] sm:$0xff]
          %v1927 = vld [vmem:[%s329 + $0x8] sm:$0xff]
          %v1928 = vld [vmem:[%s329 + $0x10] sm:$0xff]
          %v1929 = vld [vmem:[%s329 + $0x18] sm:$0xff]
          %v1930 = vld [vmem:[%s329 + $0x20] sm:$0xff]
          %v1931 = vld [vmem:[%s329 + $0x28] sm:$0xff]
          %v1932 = vld [vmem:[%s329 + $0x30] sm:$0xff]
          %v1933 = vld [vmem:[%s329 + $0x38] sm:$0xff]
          %v1934 = vld [vmem:[%s329 + $0x40] sm:$0xff]
          %v1935 = vld [vmem:[%s329 + $0x48] sm:$0xff]
          %v1936 = vld [vmem:[%s329 + $0x50] sm:$0xff]
          %v1937 = vld [vmem:[%s329 + $0x58] sm:$0xff]
          %v1938 = vld [vmem:[%s329 + $0x60] sm:$0xff]
          %v1939 = vld [vmem:[%s329 + $0x68] sm:$0xff]
          %v1940 = vld [vmem:[%s329 + $0x70] sm:$0xff]
          %v1941 = vld [vmem:[%s329 + $0x78] sm:$0xff]
          %v1942 = vld [vmem:[%s329 + $0x80] sm:$0xff]
          %v1943 = vld [vmem:[%s329 + $0x88] sm:$0xff]
          %v1944 = vld [vmem:[%s329 + $0x90] sm:$0xff]
          %v1945 = vld [vmem:[%s329 + $0x98] sm:$0xff]
          %v1946 = vld [vmem:[%s329 + $0xa0] sm:$0xff]
          %v1947 = vld [vmem:[%s329 + $0xa8] sm:$0xff]
          %v1948 = vld [vmem:[%s329 + $0xb0] sm:$0xff]
          %v1949 = vld [vmem:[%s329 + $0xb8] sm:$0xff]
          %v1950 = vld [vmem:[%s329 + $0xc0] sm:$0xff]
          %v1951 = vld [vmem:[%s329 + $0xc8] sm:$0xff]
          %v1952 = vld [vmem:[%s329 + $0xd0] sm:$0xff]
          %v1953 = vld [vmem:[%s329 + $0xd8] sm:$0xff]
          %v1954 = vld [vmem:[%s329 + $0xe0] sm:$0xff]
          %v1955 = vld [vmem:[%s329 + $0xe8] sm:$0xff]
          %v1956 = vld [vmem:[%s329 + $0xf0] sm:$0xff]
          %v1957 = vld [vmem:[%s329 + $0xf8] sm:$0xff]
          %v1958 = vld [vmem:[%s6] sm:$0x1]
          %v1960 = vlaneseq
          %v1961 = vshrl.u32 %v1960, 7
          %v1962 = vsub.s32 0, %v1961
          %v1963 = vrot.slane %v1958, %v1962
          %v1965 = vadd.f32 %v1926, %v1963
          %v1966 = vadd.f32 %v1927, %v1963
          %v1967 = vadd.f32 %v1928, %v1963
          %v1968 = vadd.f32 %v1929, %v1963
          %v1969 = vadd.f32 %v1930, %v1963
          %v1970 = vadd.f32 %v1931, %v1963
          %v1971 = vadd.f32 %v1932, %v1963
          %v1972 = vadd.f32 %v1933, %v1963
          %v1973 = vadd.f32 %v1934, %v1963
          %v1974 = vadd.f32 %v1935, %v1963
          %v1975 = vadd.f32 %v1936, %v1963
          %v1976 = vadd.f32 %v1937, %v1963
          %v1977 = vadd.f32 %v1938, %v1963
          %v1978 = vadd.f32 %v1939, %v1963
          %v1979 = vadd.f32 %v1940, %v1963
          %v1980 = vadd.f32 %v1941, %v1963
          %v1981 = vadd.f32 %v1942, %v1963
          %v1982 = vadd.f32 %v1943, %v1963
          %v1983 = vadd.f32 %v1944, %v1963
          %v1984 = vadd.f32 %v1945, %v1963
          %v1985 = vadd.f32 %v1946, %v1963
          %v1986 = vadd.f32 %v1947, %v1963
          %v1987 = vadd.f32 %v1948, %v1963
          %v1988 = vadd.f32 %v1949, %v1963
          %v1989 = vadd.f32 %v1950, %v1963
          %v1990 = vadd.f32 %v1951, %v1963
          %v1991 = vadd.f32 %v1952, %v1963
          %v1992 = vadd.f32 %v1953, %v1963
          %v1993 = vadd.f32 %v1954, %v1963
          %v1994 = vadd.f32 %v1955, %v1963
          %v1995 = vadd.f32 %v1956, %v1963
          %v1996 = vadd.f32 %v1957, %v1963
          %v1997 = vld [vmem:[%s334] sm:$0xff]
          %v1998 = vld [vmem:[%s334 + $0x8] sm:$0xff]
          %v1999 = vld [vmem:[%s334 + $0x10] sm:$0xff]
          %v2000 = vld [vmem:[%s334 + $0x18] sm:$0xff]
          %v2001 = vld [vmem:[%s334 + $0x20] sm:$0xff]
          %v2002 = vld [vmem:[%s334 + $0x28] sm:$0xff]
          %v2003 = vld [vmem:[%s334 + $0x30] sm:$0xff]
          %v2004 = vld [vmem:[%s334 + $0x38] sm:$0xff]
          %v2005 = vld [vmem:[%s334 + $0x40] sm:$0xff]
          %v2006 = vld [vmem:[%s334 + $0x48] sm:$0xff]
          %v2007 = vld [vmem:[%s334 + $0x50] sm:$0xff]
          %v2008 = vld [vmem:[%s334 + $0x58] sm:$0xff]
          %v2009 = vld [vmem:[%s334 + $0x60] sm:$0xff]
          %v2010 = vld [vmem:[%s334 + $0x68] sm:$0xff]
          %v2011 = vld [vmem:[%s334 + $0x70] sm:$0xff]
          %v2012 = vld [vmem:[%s334 + $0x78] sm:$0xff]
          %v2013 = vld [vmem:[%s334 + $0x80] sm:$0xff]
          %v2014 = vld [vmem:[%s334 + $0x88] sm:$0xff]
          %v2015 = vld [vmem:[%s334 + $0x90] sm:$0xff]
          %v2016 = vld [vmem:[%s334 + $0x98] sm:$0xff]
          %v2017 = vld [vmem:[%s334 + $0xa0] sm:$0xff]
          %v2018 = vld [vmem:[%s334 + $0xa8] sm:$0xff]
          %v2019 = vld [vmem:[%s334 + $0xb0] sm:$0xff]
          %v2020 = vld [vmem:[%s334 + $0xb8] sm:$0xff]
          %v2021 = vld [vmem:[%s334 + $0xc0] sm:$0xff]
          %v2022 = vld [vmem:[%s334 + $0xc8] sm:$0xff]
          %v2023 = vld [vmem:[%s334 + $0xd0] sm:$0xff]
          %v2024 = vld [vmem:[%s334 + $0xd8] sm:$0xff]
          %v2025 = vld [vmem:[%s334 + $0xe0] sm:$0xff]
          %v2026 = vld [vmem:[%s334 + $0xe8] sm:$0xff]
          %v2027 = vld [vmem:[%s334 + $0xf0] sm:$0xff]
          %v2028 = vld [vmem:[%s334 + $0xf8] sm:$0xff]
          %v2029 = vadd.f32 %v1965, %v1997
          %v2030 = vadd.f32 %v1966, %v1998
          %v2031 = vadd.f32 %v1967, %v1999
          %v2032 = vadd.f32 %v1968, %v2000
          %v2033 = vadd.f32 %v1969, %v2001
          %v2034 = vadd.f32 %v1970, %v2002
          %v2035 = vadd.f32 %v1971, %v2003
          %v2036 = vadd.f32 %v1972, %v2004
          %v2037 = vadd.f32 %v1973, %v2005
          %v2038 = vadd.f32 %v1974, %v2006
          %v2039 = vadd.f32 %v1975, %v2007
          %v2040 = vadd.f32 %v1976, %v2008
          %v2041 = vadd.f32 %v1977, %v2009
          %v2042 = vadd.f32 %v1978, %v2010
          %v2043 = vadd.f32 %v1979, %v2011
          %v2044 = vadd.f32 %v1980, %v2012
          %v2045 = vadd.f32 %v1981, %v2013
          %v2046 = vadd.f32 %v1982, %v2014
          %v2047 = vadd.f32 %v1983, %v2015
          %v2048 = vadd.f32 %v1984, %v2016
          %v2049 = vadd.f32 %v1985, %v2017
          %v2050 = vadd.f32 %v1986, %v2018
          %v2051 = vadd.f32 %v1987, %v2019
          %v2052 = vadd.f32 %v1988, %v2020
          %v2053 = vadd.f32 %v1989, %v2021
          %v2054 = vadd.f32 %v1990, %v2022
          %v2055 = vadd.f32 %v1991, %v2023
          %v2056 = vadd.f32 %v1992, %v2024
          %v2057 = vadd.f32 %v1993, %v2025
          %v2058 = vadd.f32 %v1994, %v2026
          %v2059 = vadd.f32 %v1995, %v2027
          %v2060 = vadd.f32 %v1996, %v2028
          %2061 = vst [vmem:[%s329] sm:$0xff] %v2029
          %2062 = vst [vmem:[%s329 + $0x8] sm:$0xff] %v2030
          %2063 = vst [vmem:[%s329 + $0x10] sm:$0xff] %v2031
          %2064 = vst [vmem:[%s329 + $0x18] sm:$0xff] %v2032
          %2065 = vst [vmem:[%s329 + $0x20] sm:$0xff] %v2033
          %2066 = vst [vmem:[%s329 + $0x28] sm:$0xff] %v2034
          %2067 = vst [vmem:[%s329 + $0x30] sm:$0xff] %v2035
          %2068 = vst [vmem:[%s329 + $0x38] sm:$0xff] %v2036
          %2069 = vst [vmem:[%s329 + $0x40] sm:$0xff] %v2037
          %2070 = vst [vmem:[%s329 + $0x48] sm:$0xff] %v2038
          %2071 = vst [vmem:[%s329 + $0x50] sm:$0xff] %v2039
          %2072 = vst [vmem:[%s329 + $0x58] sm:$0xff] %v2040
          %2073 = vst [vmem:[%s329 + $0x60] sm:$0xff] %v2041
          %2074 = vst [vmem:[%s329 + $0x68] sm:$0xff] %v2042
          %2075 = vst [vmem:[%s329 + $0x70] sm:$0xff] %v2043
          %2076 = vst [vmem:[%s329 + $0x78] sm:$0xff] %v2044
          %2077 = vst [vmem:[%s329 + $0x80] sm:$0xff] %v2045
          %2078 = vst [vmem:[%s329 + $0x88] sm:$0xff] %v2046
          %2079 = vst [vmem:[%s329 + $0x90] sm:$0xff] %v2047
          %2080 = vst [vmem:[%s329 + $0x98] sm:$0xff] %v2048
          %2081 = vst [vmem:[%s329 + $0xa0] sm:$0xff] %v2049
          %2082 = vst [vmem:[%s329 + $0xa8] sm:$0xff] %v2050
          %2083 = vst [vmem:[%s329 + $0xb0] sm:$0xff] %v2051
          %2084 = vst [vmem:[%s329 + $0xb8] sm:$0xff] %v2052
          %2085 = vst [vmem:[%s329 + $0xc0] sm:$0xff] %v2053
          %2086 = vst [vmem:[%s329 + $0xc8] sm:$0xff] %v2054
          %2087 = vst [vmem:[%s329 + $0xd0] sm:$0xff] %v2055
          %2088 = vst [vmem:[%s329 + $0xd8] sm:$0xff] %v2056
          %2089 = vst [vmem:[%s329 + $0xe0] sm:$0xff] %v2057
          %2090 = vst [vmem:[%s329 + $0xe8] sm:$0xff] %v2058
          %2091 = vst [vmem:[%s329 + $0xf0] sm:$0xff] %v2059
          %2092 = vst [vmem:[%s329 + $0xf8] sm:$0xff] %v2060
        $region56: #{positionwise_ffn.1} parent=47 // pred_fallthru
          _
        %s2093 = sand.u32 %s208, 1
        %s2094 = scalar_lea.sflag [#allocation4], %s2093
        %s2095 = sand.u32 %s208, 1
        %s2096 = smul.addr %s2095, 256
        %s2097 = scalar_lea.vmem [#allocation3], %s2096
        // Predicated region
        $region57: #{positionwise_ffn.1} parent=47 // pred_check
          %p2098 = pneg %p218
        $region58: #{positionwise_ffn.1} parent=47 // pred_check_branch
          %2100 = sbr.rel (%p2098) target = $region60
        $region59: #{positionwise_ffn.1} parent=47 // pred_region
          %s2101 = smul.u32 32, %s25
          %s2103 = ssub.s32 4096, 4096
          %2104 = vsyncadd %s2094, %s2103
          %s2105 = smul.addr %s2101, 128
          %s2106 = scalar_lea.hbm %s7, %s2105
          %s2107 = sshll.u32 %s2097, 4
          %s2108 = int_to_ptr.vmem [resolvable:$true] %s2107
          %2113 = dma.vmem_to_hbm [thread:$0]  %s2108, 4096, %s2106, %s2094, 128, 128, 8
        $region60: #{positionwise_ffn.1} parent=47 // pred_fallthru
          _
      $region48: #{positionwise_ffn.1} parent=5 // pred_fallthru
        _
      %p2114 = scmp.le.s32.totalorder 2, %s16
      // Predicated region
      $region61: #{positionwise_ffn.1} parent=5 // pred_check
        %p2115 = pneg %p2114
      $region62: #{positionwise_ffn.1} parent=5 // pred_check_branch
        %2117 = sbr.rel (%p2115) target = $region64
      $region63: #{positionwise_ffn.1} parent=5 // pred_region
        %s2118 = ssub.s32 %s16, 2
        // Predicated region
        $region65: #{positionwise_ffn.1} parent=63 // pred_check
          %p2119 = pneg %p224
        $region66: #{positionwise_ffn.1} parent=63 // pred_check_branch
          %2121 = sbr.rel (%p2119) target = $region68
        $region67: #{positionwise_ffn.1} parent=63 // pred_region
          %s2122 = sand.u32 %s209, 1
          %s2123 = scalar_lea.sflag [#allocation4], %s2122
          %s2124 = sand.u32 %s209, 1
          %s2125 = smul.addr %s2124, 256
          %s2126 = scalar_lea.vmem [#allocation3], %s2125
          %2127 = dma.done %s2123, 4096
        $region68: #{positionwise_ffn.1} parent=63 // pred_fallthru
          _
      $region64: #{positionwise_ffn.1} parent=5 // pred_fallthru
        _
    $region6: #{positionwise_ffn.1} parent=1 // loop_footer
      %s20 = sadd.s32 1, %s16
    $region7: #{positionwise_ffn.1} parent=1 // loop_footer_branch
      %15 = sbr.rel target = $region3
    $region8: #{positionwise_ffn.1} parent=1 // loop_exit
      _
    %2128 = vsyncpa [#allocation4], 1
    %s2129 = scalar_lea.sflag [#allocation4], 1
    %2130 = vsyncpa %s2129, 1

</llo_original>
